<compile_context>
chip_gen: v7x
topology: tpu7x:2x2x1
jax: 0.10.0
libtpu: 0.0.40
codegen_flags: <defaults>
</compile_context>

<pallas_src>
import math

import jax
import jax.numpy as jnp
import numpy as np
from jax.experimental import pallas as pl
from jax.experimental.pallas import tpu as pltpu


# ----------------------------------------------------------------------------
# Fused kernel: whole eval forward for one batch element
# ----------------------------------------------------------------------------
def urdmu_fused_kernel(xs_ref, cw_ref, cb_ref, mem_ref, muw_ref, mub_ref,
                       w1f_ref, w1a_ref, b1_ref, w2_ref, b2_ref, o_ref):
    """All refs are VMEM except b2_ref (SMEM).

    xs_ref : (1, T, 3*Cin) bf16   im2col'd input (conv1d k=3 pad=1 -> one matmul)
    cw_ref : (3*Cin, D)    bf16   stacked conv weight
    cb_ref : (1, D)        f32    conv bias
    mem_ref: (2K, D)       bf16   stacked memory banks [A_mem; N_mem]
    muw_ref: (D, D)        bf16   encoder_mu weight
    mub_ref: (1, D)        f32    encoder_mu bias
    w1f_ref: (D, 128)      bf16   cls_head Linear1 rows acting on feat
    w1a_ref: (D, 128)      bf16   cls_head Linear1 rows acting on the augment
    b1_ref : (1, 128)      f32
    w2_ref : (1, 128)      bf16   cls_head Linear2 (128 -> 1) as a row vector
    b2_ref : (1, 1)        f32    (SMEM scalar)
    o_ref  : (1, 1, T)     f32    per-frame scores, lane-dense (T on lanes)
    """
    f32 = jnp.float32
    bf16 = jnp.bfloat16

    # --- Temporal: Conv1d(k=3, pad=1) + ReLU as one (T, 3Cin) @ (3Cin, D) matmul
    feat = jnp.dot(xs_ref[0], cw_ref[...], preferred_element_type=f32) + cb_ref[...]
    feat = jnp.maximum(feat, 0.0)                              # (T, D) f32
    # TODO(synk): self_attn (Transformer) is undefined in the source -> identity.
    feat_b = feat.astype(bf16)

    # --- Both Memory_Units at once on the stacked banks [A_mem; N_mem]
    scores = jax.lax.dot_general(feat_b, mem_ref[...], (((1,), (1,)), ((), ())),
                                 preferred_element_type=f32)   # (T, 2K)
    att = jax.nn.sigmoid(scores * (1.0 / math.sqrt(feat.shape[-1])))
    # A_aug + N_aug == att @ [A_mem; N_mem]  (columns are independent per bank)
    aug = jnp.dot(att.astype(bf16), mem_ref[...], preferred_element_type=f32)

    # --- encoder_mu(A_aug) + encoder_mu(N_aug) == (A_aug + N_aug) @ W + 2*b
    mu_aug = (jnp.dot(aug.astype(bf16), muw_ref[...], preferred_element_type=f32)
              + 2.0 * mub_ref[...])                            # (T, D)

    # --- cls_head Linear(2D->128)+ReLU with the concat folded into a split matmul
    h = (jnp.dot(feat_b, w1f_ref[...], preferred_element_type=f32)
         + jnp.dot(mu_aug.astype(bf16), w1a_ref[...], preferred_element_type=f32)
         + b1_ref[...])
    h = jnp.maximum(h, 0.0)                                    # (T, 128)

    # --- Linear(128->1)+Sigmoid, computed transposed -> lane-dense (1, T) output
    y = jax.lax.dot_general(w2_ref[...], h.astype(bf16), (((1,), (1,)), ((), ())),
                            preferred_element_type=f32)        # (1, T)
    o_ref[0] = jax.nn.sigmoid(y + b2_ref[0, 0]).astype(o_ref.dtype)


# ----------------------------------------------------------------------------
# Wrapper
# ----------------------------------------------------------------------------
def urdmu_forward(x, p):
    """URDMU eval-branch forward.  x: (b, t, d) float32 -> {'video_scores': (b, t)}."""
    b, t, d_in = x.shape
    n = 1
    D = p["mu_w"].shape[0]
    K2 = p["A_mem"].shape[0] + p["N_mem"].shape[0]
    bf16 = jnp.bfloat16

    # im2col for Conv1d(k=3, pad=1), built once outside the kernel (tiny):
    # channel order [x[t-1], x[t], x[t+1]] matches conv_w.reshape(3*Cin, Cout).
    xp = jnp.pad(x, ((0, 0), (1, 1), (0, 0)))
    x_shift = jnp.concatenate([xp[:, :-2], xp[:, 1:-1], xp[:, 2:]], axis=-1)

    conv_w = p["conv_w"].reshape(3 * d_in, D).astype(bf16)
    mem_all = jnp.concatenate([p["A_mem"], p["N_mem"]], axis=0).astype(bf16)
    w1f = p["c1_w"][:D].astype(bf16)          # acts on feat
    w1a = p["c1_w"][D:].astype(bf16)          # acts on the summed augment
    w2 = p["c2_w"].reshape(1, 128).astype(bf16)

    rep = lambda i: (0, 0)   # weights: same block every grid step (no re-DMA)

    out = pl.pallas_call(
        urdmu_fused_kernel,
        out_shape=jax.ShapeDtypeStruct((b * n, 1, t), jnp.float32),
        grid=(b * n,),
        in_specs=[
            pl.BlockSpec((1, t, 3 * d_in), lambda i: (i, 0, 0)),   # x_shift
            pl.BlockSpec((3 * d_in, D), rep),                      # conv_w (stacked)
            pl.BlockSpec((1, D), rep),                             # conv_b
            pl.BlockSpec((K2, D), rep),                            # [A_mem; N_mem]
            pl.BlockSpec((D, D), rep),                             # mu_w
            pl.BlockSpec((1, D), rep),                             # mu_b
            pl.BlockSpec((D, 128), rep),                           # c1_w (feat half)
            pl.BlockSpec((D, 128), rep),                           # c1_w (aug half)
            pl.BlockSpec((1, 128), rep),                           # c1_b
            pl.BlockSpec((1, 128), rep),                           # c2_w as row
            pl.BlockSpec(memory_space=pltpu.MemorySpace.SMEM),     # c2_b scalar
        ],
        out_specs=pl.BlockSpec((1, 1, t), lambda i: (i, 0, 0)),
        compiler_params=pltpu.CompilerParams(
            # one TC-loop step per batch element on v5e/v6e; shards the batch
            # across the two TensorCores on v7x.
            dimension_semantics=("parallel",)),
    )(x_shift.astype(bf16), conv_w, p["conv_b"], mem_all,
      p["mu_w"].astype(bf16), p["mu_b"], w1f, w1a, p["c1_b"], w2, p["c2_b"])

    video_scores = out.reshape(b, n, t).mean(axis=1)   # n == 1 in the eval path
    return {"video_scores": video_scores}


# ----------------------------------------------------------------------------
# Pure-JAX f32 reference (mirrors the PyTorch semantics) for a correctness check
# ----------------------------------------------------------------------------
def reference_forward(x, p):
    hp = jax.lax.Precision.HIGHEST
    xp = jnp.pad(x, ((0, 0), (1, 1), (0, 0)))
    emb = (jnp.einsum("btd,de->bte", xp[:, :-2], p["conv_w"][0], precision=hp)
           + jnp.einsum("btd,de->bte", xp[:, 1:-1], p["conv_w"][1], precision=hp)
           + jnp.einsum("btd,de->bte", xp[:, 2:], p["conv_w"][2], precision=hp)
           + p["conv_b"])
    emb = jnp.maximum(emb, 0.0)

    def mem(feat, M):
        att = jax.nn.sigmoid(
            jnp.einsum("btd,kd->btk", feat, M, precision=hp) / (feat.shape[-1] ** 0.5))
        return jnp.einsum("btk,kd->btd", att, M, precision=hp)

    a_aug = jnp.einsum("btd,de->bte", mem(emb, p["A_mem"]), p["mu_w"], precision=hp) + p["mu_b"]
    n_aug = jnp.einsum("btd,de->bte", mem(emb, p["N_mem"]), p["mu_w"], precision=hp) + p["mu_b"]
    x_cat = jnp.concatenate([emb, a_aug + n_aug], axis=-1)
    h = jnp.maximum(jnp.einsum("btd,dh->bth", x_cat, p["c1_w"], precision=hp) + p["c1_b"], 0.0)
    y = jax.nn.sigmoid(jnp.einsum("bth,ho->bto", h, p["c2_w"], precision=hp) + p["c2_b"])
    b = x.shape[0]
    return y.reshape(b, 1, -1).mean(axis=1)


# ----------------------------------------------------------------------------
# Main
# ----------------------------------------------------------------------------
if __name__ == "__main__":
    input_size = 64
    dim_out = 512            # hardcoded in URDMU
    a_nums = 16
    n_nums = 16
    b, t = 2, 16

    key = jax.random.PRNGKey(0)
    ks = jax.random.split(key, 11)

    def uni(k, shape, fan_in):
        bound = 1.0 / math.sqrt(fan_in)
        return jax.random.uniform(k, shape, jnp.float32, -bound, bound)

    params = {
        # Temporal: Conv1d(input_size -> 512, k=3, pad=1) stored as (3, Cin, Cout)
        "conv_w": uni(ks[0], (3, input_size, dim_out), 3 * input_size),
        "conv_b": uni(ks[1], (1, dim_out), 3 * input_size),
        # Memory blocks, uniform(-1/sqrt(dim), 1/sqrt(dim)) like the module
        "A_mem": uni(ks[2], (a_nums, dim_out), dim_out),
        "N_mem": uni(ks[3], (n_nums, dim_out), dim_out),
        # encoder_mu: Linear(512 -> 512), weights stored as (in, out)
        "mu_w": uni(ks[4], (dim_out, dim_out), dim_out),
        "mu_b": uni(ks[5], (1, dim_out), dim_out),
        # cls_head: Linear(1024 -> 128) -> ReLU -> Linear(128 -> 1) -> Sigmoid
        "c1_w": uni(ks[6], (2 * dim_out, 128), 2 * dim_out),
        "c1_b": uni(ks[7], (1, 128), 2 * dim_out),
        "c2_w": uni(ks[8], (128, 1), 128),
        "c2_b": uni(ks[9], (1, 1), 128),
    }

    x = jax.random.normal(ks[10], (b, t, input_size), jnp.float32)

    out = jax.jit(urdmu_forward)(x, params)
    scores = jax.block_until_ready(out["video_scores"])

    ref = reference_forward(x, params)
    np.testing.assert_allclose(np.asarray(scores), np.asarray(ref), rtol=1e-2, atol=1e-2)
    assert scores.shape == (b, t)

    print("KERNEL_OK")
</pallas_src>

<mosaic_0001>
module attributes {stable_mosaic.version = 11 : i64} {
  func.func @urdmu_fused_kernel(%arg0: i32, %arg1: memref<1x16x192xbf16, #tpu.memory_space<vmem>>, %arg2: memref<192x512xbf16, #tpu.memory_space<vmem>>, %arg3: memref<1x512xf32, #tpu.memory_space<vmem>>, %arg4: memref<32x512xbf16, #tpu.memory_space<vmem>>, %arg5: memref<512x512xbf16, #tpu.memory_space<vmem>>, %arg6: memref<1x512xf32, #tpu.memory_space<vmem>>, %arg7: memref<512x128xbf16, #tpu.memory_space<vmem>>, %arg8: memref<512x128xbf16, #tpu.memory_space<vmem>>, %arg9: memref<1x128xf32, #tpu.memory_space<vmem>>, %arg10: memref<1x128xbf16, #tpu.memory_space<vmem>>, %arg11: memref<1x1xf32, #tpu.memory_space<smem>>, %arg12: memref<1x1x16xf32, #tpu.memory_space<vmem>>) attributes {dimension_semantics = [#tpu.dimension_semantics<parallel>], iteration_bounds = array<i64: 2>, scalar_prefetch = 0 : i64, scratch_operands = 0 : i64, tpu.core_type = #tpu.core_type<tc>, window_params = [{transform_indices = @transform_0, window_bounds = array<i64: 1, 16, 192>}, {pipeline_mode = #tpu.pipeline_mode<synchronous>, transform_indices = @transform_1, window_bounds = array<i64: 192, 512>}, {pipeline_mode = #tpu.pipeline_mode<synchronous>, transform_indices = @transform_2, window_bounds = array<i64: 1, 512>}, {pipeline_mode = #tpu.pipeline_mode<synchronous>, transform_indices = @transform_3, window_bounds = array<i64: 32, 512>}, {pipeline_mode = #tpu.pipeline_mode<synchronous>, transform_indices = @transform_4, window_bounds = array<i64: 512, 512>}, {pipeline_mode = #tpu.pipeline_mode<synchronous>, transform_indices = @transform_5, window_bounds = array<i64: 1, 512>}, {pipeline_mode = #tpu.pipeline_mode<synchronous>, transform_indices = @transform_6, window_bounds = array<i64: 512, 128>}, {pipeline_mode = #tpu.pipeline_mode<synchronous>, transform_indices = @transform_7, window_bounds = array<i64: 512, 128>}, {pipeline_mode = #tpu.pipeline_mode<synchronous>, transform_indices = @transform_8, window_bounds = array<i64: 1, 128>}, {pipeline_mode = #tpu.pipeline_mode<synchronous>, transform_indices = @transform_9, window_bounds = array<i64: 1, 128>}, {transform_indices = @transform_10, window_bounds = array<i64: 1, 1>}, {transform_indices = @transform_11, window_bounds = array<i64: 1, 1, 16>}]} {
    %c0 = arith.constant 0 : index
    %c0_0 = arith.constant 0 : index
    %c0_1 = arith.constant 0 : index
    %0 = vector.load %arg1[%c0, %c0_0, %c0_1] : memref<1x16x192xbf16, #tpu.memory_space<vmem>>, vector<1x16x192xbf16>
    %1 = vector.shape_cast %0 : vector<1x16x192xbf16> to vector<16x192xbf16>
    %c0_2 = arith.constant 0 : index
    %c0_3 = arith.constant 0 : index
    %2 = vector.load %arg2[%c0_2, %c0_3] : memref<192x512xbf16, #tpu.memory_space<vmem>>, vector<192x512xbf16>
    %cst = arith.constant dense<0.000000e+00> : vector<16x512xf32>
    %3 = tpu.matmul %1, %2, %cst {dimension_numbers = #tpu.dot_dimension_numbers<[1], [0], [0], [1], [0, 0, 1, 1], [], []>} : vector<16x192xbf16>, vector<192x512xbf16>, vector<16x512xf32> -> vector<16x512xf32>
    %c0_4 = arith.constant 0 : index
    %c0_5 = arith.constant 0 : index
    %4 = vector.load %arg3[%c0_4, %c0_5] : memref<1x512xf32, #tpu.memory_space<vmem>>, vector<1x512xf32>
    %5 = vector.broadcast %4 : vector<1x512xf32> to vector<16x512xf32>
    %6 = arith.addf %3, %5 : vector<16x512xf32>
    %cst_6 = arith.constant 0.000000e+00 : f32
    %7 = vector.broadcast %cst_6 : f32 to vector<16x512xf32>
    %8 = arith.maximumf %6, %7 : vector<16x512xf32>
    %9 = arith.truncf %8 : vector<16x512xf32> to vector<16x512xbf16>
    %c0_7 = arith.constant 0 : index
    %c0_8 = arith.constant 0 : index
    %10 = vector.load %arg4[%c0_7, %c0_8] : memref<32x512xbf16, #tpu.memory_space<vmem>>, vector<32x512xbf16>
    %cst_9 = arith.constant dense<0.000000e+00> : vector<16x32xf32>
    %11 = tpu.matmul %9, %10, %cst_9 {dimension_numbers = #tpu.dot_dimension_numbers<[1], [1], [0], [0], [0, 0, 1, 0], [], []>} : vector<16x512xbf16>, vector<32x512xbf16>, vector<16x32xf32> -> vector<16x32xf32>
    %cst_10 = arith.constant 0.0441941731 : f32
    %12 = vector.broadcast %cst_10 : f32 to vector<16x32xf32>
    %13 = arith.mulf %11, %12 : vector<16x32xf32>
    %14 = arith.negf %13 : vector<16x32xf32>
    %15 = math.exp %14 : vector<16x32xf32>
    %cst_11 = arith.constant 1.000000e+00 : f32
    %16 = vector.broadcast %cst_11 : f32 to vector<16x32xf32>
    %17 = arith.addf %16, %15 : vector<16x32xf32>
    %18 = arith.divf %16, %17 : vector<16x32xf32>
    %19 = arith.truncf %18 : vector<16x32xf32> to vector<16x32xbf16>
    %c0_12 = arith.constant 0 : index
    %c0_13 = arith.constant 0 : index
    %20 = vector.load %arg4[%c0_12, %c0_13] : memref<32x512xbf16, #tpu.memory_space<vmem>>, vector<32x512xbf16>
    %cst_14 = arith.constant dense<0.000000e+00> : vector<16x512xf32>
    %21 = tpu.matmul %19, %20, %cst_14 {dimension_numbers = #tpu.dot_dimension_numbers<[1], [0], [0], [1], [0, 0, 1, 1], [], []>} : vector<16x32xbf16>, vector<32x512xbf16>, vector<16x512xf32> -> vector<16x512xf32>
    %22 = arith.truncf %21 : vector<16x512xf32> to vector<16x512xbf16>
    %c0_15 = arith.constant 0 : index
    %c0_16 = arith.constant 0 : index
    %23 = vector.load %arg5[%c0_15, %c0_16] : memref<512x512xbf16, #tpu.memory_space<vmem>>, vector<512x512xbf16>
    %cst_17 = arith.constant dense<0.000000e+00> : vector<16x512xf32>
    %24 = tpu.matmul %22, %23, %cst_17 {dimension_numbers = #tpu.dot_dimension_numbers<[1], [0], [0], [1], [0, 0, 1, 1], [], []>} : vector<16x512xbf16>, vector<512x512xbf16>, vector<16x512xf32> -> vector<16x512xf32>
    %c0_18 = arith.constant 0 : index
    %c0_19 = arith.constant 0 : index
    %25 = vector.load %arg6[%c0_18, %c0_19] : memref<1x512xf32, #tpu.memory_space<vmem>>, vector<1x512xf32>
    %cst_20 = arith.constant 2.000000e+00 : f32
    %26 = vector.broadcast %cst_20 : f32 to vector<1x512xf32>
    %27 = arith.mulf %26, %25 : vector<1x512xf32>
    %28 = vector.broadcast %27 : vector<1x512xf32> to vector<16x512xf32>
    %29 = arith.addf %24, %28 : vector<16x512xf32>
    %c0_21 = arith.constant 0 : index
    %c0_22 = arith.constant 0 : index
    %30 = vector.load %arg7[%c0_21, %c0_22] : memref<512x128xbf16, #tpu.memory_space<vmem>>, vector<512x128xbf16>
    %cst_23 = arith.constant dense<0.000000e+00> : vector<16x128xf32>
    %31 = tpu.matmul %9, %30, %cst_23 {dimension_numbers = #tpu.dot_dimension_numbers<[1], [0], [0], [1], [0, 0, 1, 1], [], []>} : vector<16x512xbf16>, vector<512x128xbf16>, vector<16x128xf32> -> vector<16x128xf32>
    %32 = arith.truncf %29 : vector<16x512xf32> to vector<16x512xbf16>
    %c0_24 = arith.constant 0 : index
    %c0_25 = arith.constant 0 : index
    %33 = vector.load %arg8[%c0_24, %c0_25] : memref<512x128xbf16, #tpu.memory_space<vmem>>, vector<512x128xbf16>
    %cst_26 = arith.constant dense<0.000000e+00> : vector<16x128xf32>
    %34 = tpu.matmul %32, %33, %cst_26 {dimension_numbers = #tpu.dot_dimension_numbers<[1], [0], [0], [1], [0, 0, 1, 1], [], []>} : vector<16x512xbf16>, vector<512x128xbf16>, vector<16x128xf32> -> vector<16x128xf32>
    %35 = arith.addf %31, %34 : vector<16x128xf32>
    %c0_27 = arith.constant 0 : index
    %c0_28 = arith.constant 0 : index
    %36 = vector.load %arg9[%c0_27, %c0_28] : memref<1x128xf32, #tpu.memory_space<vmem>>, vector<1x128xf32>
    %37 = vector.broadcast %36 : vector<1x128xf32> to vector<16x128xf32>
    %38 = arith.addf %35, %37 : vector<16x128xf32>
    %cst_29 = arith.constant 0.000000e+00 : f32
    %39 = vector.broadcast %cst_29 : f32 to vector<16x128xf32>
    %40 = arith.maximumf %38, %39 : vector<16x128xf32>
    %c0_30 = arith.constant 0 : index
    %c0_31 = arith.constant 0 : index
    %41 = vector.load %arg10[%c0_30, %c0_31] : memref<1x128xbf16, #tpu.memory_space<vmem>>, vector<1x128xbf16>
    %42 = arith.truncf %40 : vector<16x128xf32> to vector<16x128xbf16>
    %cst_32 = arith.constant dense<0.000000e+00> : vector<1x16xf32>
    %43 = tpu.matmul %41, %42, %cst_32 {dimension_numbers = #tpu.dot_dimension_numbers<[1], [1], [0], [0], [0, 0, 1, 0], [], []>} : vector<1x128xbf16>, vector<16x128xbf16>, vector<1x16xf32> -> vector<1x16xf32>
    %c0_33 = arith.constant 0 : index
    %c0_34 = arith.constant 0 : index
    %44 = memref.load %arg11[%c0_33, %c0_34] : memref<1x1xf32, #tpu.memory_space<smem>>
    %45 = vector.broadcast %44 : f32 to vector<1x16xf32>
    %46 = arith.addf %43, %45 : vector<1x16xf32>
    %47 = arith.negf %46 : vector<1x16xf32>
    %48 = math.exp %47 : vector<1x16xf32>
    %cst_35 = arith.constant 1.000000e+00 : f32
    %49 = vector.broadcast %cst_35 : f32 to vector<1x16xf32>
    %50 = arith.addf %49, %48 : vector<1x16xf32>
    %51 = arith.divf %49, %50 : vector<1x16xf32>
    %c0_36 = arith.constant 0 : index
    %c0_37 = arith.constant 0 : index
    %c0_38 = arith.constant 0 : index
    %52 = vector.load %arg12[%c0_36, %c0_37, %c0_38] : memref<1x1x16xf32, #tpu.memory_space<vmem>>, vector<1x1x16xf32>
    %53 = vector.shape_cast %52 : vector<1x1x16xf32> to vector<1x16xf32>
    %54 = vector.shape_cast %51 : vector<1x16xf32> to vector<1x1x16xf32>
    tpu.vector_store %arg12[%c0_36, %c0_37, %c0_38], %54 {strides = array<i32>} : memref<1x1x16xf32, #tpu.memory_space<vmem>>, vector<1x1x16xf32>,
    return
  }
  func.func @transform_0(%arg0: i32) -> (i32, i32, i32) {
    %c0_i32 = arith.constant 0 : i32
    %c0_i32_0 = arith.constant 0 : i32
    %c0_i32_1 = arith.constant 0 : i32
    return %arg0, %c0_i32, %c0_i32_0 : i32, i32, i32
  }
  func.func @transform_1(%arg0: i32) -> (i32, i32) {
    %c0_i32 = arith.constant 0 : i32
    %c0_i32_0 = arith.constant 0 : i32
    %c0_i32_1 = arith.constant 0 : i32
    return %c0_i32, %c0_i32_0 : i32, i32
  }
  func.func @transform_2(%arg0: i32) -> (i32, i32) {
    %c0_i32 = arith.constant 0 : i32
    %c0_i32_0 = arith.constant 0 : i32
    %c0_i32_1 = arith.constant 0 : i32
    return %c0_i32, %c0_i32_0 : i32, i32
  }
  func.func @transform_3(%arg0: i32) -> (i32, i32) {
    %c0_i32 = arith.constant 0 : i32
    %c0_i32_0 = arith.constant 0 : i32
    %c0_i32_1 = arith.constant 0 : i32
    return %c0_i32, %c0_i32_0 : i32, i32
  }
  func.func @transform_4(%arg0: i32) -> (i32, i32) {
    %c0_i32 = arith.constant 0 : i32
    %c0_i32_0 = arith.constant 0 : i32
    %c0_i32_1 = arith.constant 0 : i32
    return %c0_i32, %c0_i32_0 : i32, i32
  }
  func.func @transform_5(%arg0: i32) -> (i32, i32) {
    %c0_i32 = arith.constant 0 : i32
    %c0_i32_0 = arith.constant 0 : i32
    %c0_i32_1 = arith.constant 0 : i32
    return %c0_i32, %c0_i32_0 : i32, i32
  }
  func.func @transform_6(%arg0: i32) -> (i32, i32) {
    %c0_i32 = arith.constant 0 : i32
    %c0_i32_0 = arith.constant 0 : i32
    %c0_i32_1 = arith.constant 0 : i32
    return %c0_i32, %c0_i32_0 : i32, i32
  }
  func.func @transform_7(%arg0: i32) -> (i32, i32) {
    %c0_i32 = arith.constant 0 : i32
    %c0_i32_0 = arith.constant 0 : i32
    %c0_i32_1 = arith.constant 0 : i32
    return %c0_i32, %c0_i32_0 : i32, i32
  }
  func.func @transform_8(%arg0: i32) -> (i32, i32) {
    %c0_i32 = arith.constant 0 : i32
    %c0_i32_0 = arith.constant 0 : i32
    %c0_i32_1 = arith.constant 0 : i32
    return %c0_i32, %c0_i32_0 : i32, i32
  }
  func.func @transform_9(%arg0: i32) -> (i32, i32) {
    %c0_i32 = arith.constant 0 : i32
    %c0_i32_0 = arith.constant 0 : i32
    %c0_i32_1 = arith.constant 0 : i32
    return %c0_i32, %c0_i32_0 : i32, i32
  }
  func.func @transform_10(%arg0: i32) -> (i32, i32) {
    %c0_i32 = arith.constant 0 : i32
    %c0_i32_0 = arith.constant 0 : i32
    %c0_i32_1 = arith.constant 0 : i32
    return %c0_i32, %c0_i32_0 : i32, i32
  }
  func.func @transform_11(%arg0: i32) -> (i32, i32, i32) {
    %c0_i32 = arith.constant 0 : i32
    %c0_i32_0 = arith.constant 0 : i32
    %c0_i32_1 = arith.constant 0 : i32
    return %arg0, %c0_i32, %c0_i32_0 : i32, i32, i32
  }
}

</mosaic_0001>

<llo_original>
// kernel: urdmu_forward.1
$region0: #{urdmu_forward.1}
  #allocation0 [shape = 'u32[]', space=smem, size = 0x4, offset = 0x4, fixed_abs, tag = 'smem constant byte address 0x4 - core index']
  #allocation1 [shape = 'u32[144,128]{1,0:T(1,128)}', space=vmem, size = 0x12000, scoped, tag = 'internal scratch']
  #allocation2 [shape = 'f32[1,1]{1,0:T(1,128)S(6)}', space=smem, size = 0x200, scoped, tag = 'scoped memory for urdmu_forward.1']
  %s0 = inlined_call_operand.vmem [shape: bf16[2,16,192], index: 0, kind: input, shape index: {}]
  %s1 = inlined_call_operand.vmem [shape: bf16[192,512], index: 1, kind: input, shape index: {}]
  %s2 = inlined_call_operand.vmem [shape: f32[1,512], index: 2, kind: input, shape index: {}]
  %s3 = inlined_call_operand.vmem [shape: bf16[32,512], index: 3, kind: input, shape index: {}]
  %s4 = inlined_call_operand.vmem [shape: bf16[512,512], index: 4, kind: input, shape index: {}]
  %s5 = inlined_call_operand.vmem [shape: f32[1,512], index: 5, kind: input, shape index: {}]
  %s6 = inlined_call_operand.vmem [shape: bf16[512,128], index: 6, kind: input, shape index: {}]
  %s7 = inlined_call_operand.vmem [shape: bf16[512,128], index: 7, kind: input, shape index: {}]
  %s8 = inlined_call_operand.vmem [shape: f32[1,128], index: 8, kind: input, shape index: {}]
  %s9 = inlined_call_operand.vmem [shape: bf16[1,128], index: 9, kind: input, shape index: {}]
  %s10 = inlined_call_operand.<no memory space> [shape: f32[1,1], index: 10, kind: input, shape index: {}]
  %s11 = inlined_call_operand.hbm [shape: f32[2,1,16], index: 11, kind: output, shape index: {}]
  %s12 = sld [smem:[#allocation0]]
  $region77: #{urdmu_forward.1} parent=0
    _
  %s14 = ssub.s32 1, %s12
  %s15 = scalar_select 0, %s14, %s12
  %16 = sst [smem:[#allocation2]] %s10
  $region1: #{urdmu_forward.1} parent=0
    #allocation3 [shape = 'u8[1024]{0}', space=vmem, size = 0x400, scoped, tag = 'output window, operand 0']
    #allocation4 [shape = 's32[2]{0}', space=sflag, size = 0x8, scoped, tag = 'scoped memory for urdmu_forward.1']
    %17 = vsyncpa [#allocation4], 0
    %s18 = scalar_lea.sflag [#allocation4], 1
    %19 = vsyncpa %s18, 0
    loop: start=0, step=1, limit=4
    $region2: #{urdmu_forward.1} parent=1 // loop_pre_header
      _
    $region3: #{urdmu_forward.1} parent=1 // loop_header
      %s21 = sphi 0, %s25
      %p22 = scmp.ge.s32.totalorder %s21, 4
      %s31 = sphi 0, %s33
      %s34 = sphi 0, %s31
      %s35 = sphi 0, %s34
      %s51 = sphi 0, %s35
      %s55 = sphi 0, %s55
      %s57 = sphi 0, %s55
      %s58 = sphi 0, %s57
      %s72 = sphi 0, %s58
      %s76 = sphi 0, %s76
      %s78 = sphi 0, %s76
      %s79 = sphi 0, %s78
      %s93 = sphi 0, %s79
      %s97 = sphi 0, %s97
      %s99 = sphi 0, %s97
      %s100 = sphi 0, %s99
      %s114 = sphi 0, %s100
      %s118 = sphi 0, %s118
      %s120 = sphi 0, %s118
      %s121 = sphi 0, %s120
      %s135 = sphi 0, %s121
      %s139 = sphi 0, %s139
      %s141 = sphi 0, %s139
      %s142 = sphi 0, %s141
      %s156 = sphi 0, %s142
      %s160 = sphi 0, %s160
      %s162 = sphi 0, %s160
      %s163 = sphi 0, %s162
      %s177 = sphi 0, %s163
      %s181 = sphi 0, %s181
      %s183 = sphi 0, %s181
      %s184 = sphi 0, %s183
      %s198 = sphi 0, %s184
      %s202 = sphi 0, %s202
      %s204 = sphi 0, %s202
      %s205 = sphi 0, %s204
      %s219 = sphi 0, %s205
      %s223 = sphi 0, %s223
      %s225 = sphi 0, %s223
      %s226 = sphi 0, %s225
      %s240 = sphi 0, %s226
      %s244 = sphi 0, %s244
      %s246 = sphi 0, %s244
      %s247 = sphi 0, %s246
      %s261 = sphi 0, %s247
      %s267 = sphi 0, %s269
      %s270 = sphi 0, %s267
      %s271 = sphi 0, %s270
      %s287 = sphi 0, %s271
    $region4: #{urdmu_forward.1} parent=1 // loop_header_branch
      %24 = sbr.rel (%p22) target = $region8
    $region5: #{urdmu_forward.1} parent=1 // loop_body
      %s26 = ssub.s32 %s21, 1
      %s27 = ssub.s32 %s21, 2
      %s28 = sadd.s32 %s21, 1
      %s29 = ssub.s32 %s21, %s28
      %p30 = scmp.eq.s32.totalorder %s29, 0
      %s32 = sadd.s32 %s31, 1
      %s33 = scalar_select %p30, %s31, %s32
      %p36 = pneg %p30
      %p37 = scmp.eq.s32.totalorder %s21, 1
      %p38 = por %p36, %p37
      %p39 = scmp.ne.s32.totalorder %s31, %s34
      %p40 = scmp.eq.s32.totalorder %s21, 0
      %p41 = por %p39, %p40
      %p42 = scmp.ne.s32.totalorder %s31, %s34
      %p43 = scmp.eq.s32.totalorder %s26, 1
      %p44 = por %p42, %p43
      %p45 = scmp.ne.s32.totalorder %s34, %s35
      %p46 = scmp.eq.s32.totalorder %s26, 0
      %p47 = por %p45, %p46
      %p48 = scmp.ne.s32.totalorder %s34, %s35
      %p49 = scmp.eq.s32.totalorder %s27, 1
      %p50 = por %p48, %p49
      %p52 = scmp.ne.s32.totalorder %s35, %s51
      %p53 = scmp.eq.s32.totalorder %s27, 0
      %p54 = por %p52, %p53
      %s56 = sadd.s32 %s55, 1
      %p59 = scmp.eq.s32.totalorder %s21, 1
      %p60 = scmp.ne.s32.totalorder %s55, %s57
      %p61 = scmp.eq.s32.totalorder %s21, 0
      %p62 = por %p60, %p61
      %p63 = scmp.ne.s32.totalorder %s55, %s57
      %p64 = scmp.eq.s32.totalorder %s26, 1
      %p65 = por %p63, %p64
      %p66 = scmp.ne.s32.totalorder %s57, %s58
      %p67 = scmp.eq.s32.totalorder %s26, 0
      %p68 = por %p66, %p67
      %p69 = scmp.ne.s32.totalorder %s57, %s58
      %p70 = scmp.eq.s32.totalorder %s27, 1
      %p71 = por %p69, %p70
      %p73 = scmp.ne.s32.totalorder %s58, %s72
      %p74 = scmp.eq.s32.totalorder %s27, 0
      %p75 = por %p73, %p74
      %s77 = sadd.s32 %s76, 1
      %p80 = scmp.eq.s32.totalorder %s21, 1
      %p81 = scmp.ne.s32.totalorder %s76, %s78
      %p82 = scmp.eq.s32.totalorder %s21, 0
      %p83 = por %p81, %p82
      %p84 = scmp.ne.s32.totalorder %s76, %s78
      %p85 = scmp.eq.s32.totalorder %s26, 1
      %p86 = por %p84, %p85
      %p87 = scmp.ne.s32.totalorder %s78, %s79
      %p88 = scmp.eq.s32.totalorder %s26, 0
      %p89 = por %p87, %p88
      %p90 = scmp.ne.s32.totalorder %s78, %s79
      %p91 = scmp.eq.s32.totalorder %s27, 1
      %p92 = por %p90, %p91
      %p94 = scmp.ne.s32.totalorder %s79, %s93
      %p95 = scmp.eq.s32.totalorder %s27, 0
      %p96 = por %p94, %p95
      %s98 = sadd.s32 %s97, 1
      %p101 = scmp.eq.s32.totalorder %s21, 1
      %p102 = scmp.ne.s32.totalorder %s97, %s99
      %p103 = scmp.eq.s32.totalorder %s21, 0
      %p104 = por %p102, %p103
      %p105 = scmp.ne.s32.totalorder %s97, %s99
      %p106 = scmp.eq.s32.totalorder %s26, 1
      %p107 = por %p105, %p106
      %p108 = scmp.ne.s32.totalorder %s99, %s100
      %p109 = scmp.eq.s32.totalorder %s26, 0
      %p110 = por %p108, %p109
      %p111 = scmp.ne.s32.totalorder %s99, %s100
      %p112 = scmp.eq.s32.totalorder %s27, 1
      %p113 = por %p111, %p112
      %p115 = scmp.ne.s32.totalorder %s100, %s114
      %p116 = scmp.eq.s32.totalorder %s27, 0
      %p117 = por %p115, %p116
      %s119 = sadd.s32 %s118, 1
      %p122 = scmp.eq.s32.totalorder %s21, 1
      %p123 = scmp.ne.s32.totalorder %s118, %s120
      %p124 = scmp.eq.s32.totalorder %s21, 0
      %p125 = por %p123, %p124
      %p126 = scmp.ne.s32.totalorder %s118, %s120
      %p127 = scmp.eq.s32.totalorder %s26, 1
      %p128 = por %p126, %p127
      %p129 = scmp.ne.s32.totalorder %s120, %s121
      %p130 = scmp.eq.s32.totalorder %s26, 0
      %p131 = por %p129, %p130
      %p132 = scmp.ne.s32.totalorder %s120, %s121
      %p133 = scmp.eq.s32.totalorder %s27, 1
      %p134 = por %p132, %p133
      %p136 = scmp.ne.s32.totalorder %s121, %s135
      %p137 = scmp.eq.s32.totalorder %s27, 0
      %p138 = por %p136, %p137
      %s140 = sadd.s32 %s139, 1
      %p143 = scmp.eq.s32.totalorder %s21, 1
      %p144 = scmp.ne.s32.totalorder %s139, %s141
      %p145 = scmp.eq.s32.totalorder %s21, 0
      %p146 = por %p144, %p145
      %p147 = scmp.ne.s32.totalorder %s139, %s141
      %p148 = scmp.eq.s32.totalorder %s26, 1
      %p149 = por %p147, %p148
      %p150 = scmp.ne.s32.totalorder %s141, %s142
      %p151 = scmp.eq.s32.totalorder %s26, 0
      %p152 = por %p150, %p151
      %p153 = scmp.ne.s32.totalorder %s141, %s142
      %p154 = scmp.eq.s32.totalorder %s27, 1
      %p155 = por %p153, %p154
      %p157 = scmp.ne.s32.totalorder %s142, %s156
      %p158 = scmp.eq.s32.totalorder %s27, 0
      %p159 = por %p157, %p158
      %s161 = sadd.s32 %s160, 1
      %p164 = scmp.eq.s32.totalorder %s21, 1
      %p165 = scmp.ne.s32.totalorder %s160, %s162
      %p166 = scmp.eq.s32.totalorder %s21, 0
      %p167 = por %p165, %p166
      %p168 = scmp.ne.s32.totalorder %s160, %s162
      %p169 = scmp.eq.s32.totalorder %s26, 1
      %p170 = por %p168, %p169
      %p171 = scmp.ne.s32.totalorder %s162, %s163
      %p172 = scmp.eq.s32.totalorder %s26, 0
      %p173 = por %p171, %p172
      %p174 = scmp.ne.s32.totalorder %s162, %s163
      %p175 = scmp.eq.s32.totalorder %s27, 1
      %p176 = por %p174, %p175
      %p178 = scmp.ne.s32.totalorder %s163, %s177
      %p179 = scmp.eq.s32.totalorder %s27, 0
      %p180 = por %p178, %p179
      %s182 = sadd.s32 %s181, 1
      %p185 = scmp.eq.s32.totalorder %s21, 1
      %p186 = scmp.ne.s32.totalorder %s181, %s183
      %p187 = scmp.eq.s32.totalorder %s21, 0
      %p188 = por %p186, %p187
      %p189 = scmp.ne.s32.totalorder %s181, %s183
      %p190 = scmp.eq.s32.totalorder %s26, 1
      %p191 = por %p189, %p190
      %p192 = scmp.ne.s32.totalorder %s183, %s184
      %p193 = scmp.eq.s32.totalorder %s26, 0
      %p194 = por %p192, %p193
      %p195 = scmp.ne.s32.totalorder %s183, %s184
      %p196 = scmp.eq.s32.totalorder %s27, 1
      %p197 = por %p195, %p196
      %p199 = scmp.ne.s32.totalorder %s184, %s198
      %p200 = scmp.eq.s32.totalorder %s27, 0
      %p201 = por %p199, %p200
      %s203 = sadd.s32 %s202, 1
      %p206 = scmp.eq.s32.totalorder %s21, 1
      %p207 = scmp.ne.s32.totalorder %s202, %s204
      %p208 = scmp.eq.s32.totalorder %s21, 0
      %p209 = por %p207, %p208
      %p210 = scmp.ne.s32.totalorder %s202, %s204
      %p211 = scmp.eq.s32.totalorder %s26, 1
      %p212 = por %p210, %p211
      %p213 = scmp.ne.s32.totalorder %s204, %s205
      %p214 = scmp.eq.s32.totalorder %s26, 0
      %p215 = por %p213, %p214
      %p216 = scmp.ne.s32.totalorder %s204, %s205
      %p217 = scmp.eq.s32.totalorder %s27, 1
      %p218 = por %p216, %p217
      %p220 = scmp.ne.s32.totalorder %s205, %s219
      %p221 = scmp.eq.s32.totalorder %s27, 0
      %p222 = por %p220, %p221
      %s224 = sadd.s32 %s223, 1
      %p227 = scmp.eq.s32.totalorder %s21, 1
      %p228 = scmp.ne.s32.totalorder %s223, %s225
      %p229 = scmp.eq.s32.totalorder %s21, 0
      %p230 = por %p228, %p229
      %p231 = scmp.ne.s32.totalorder %s223, %s225
      %p232 = scmp.eq.s32.totalorder %s26, 1
      %p233 = por %p231, %p232
      %p234 = scmp.ne.s32.totalorder %s225, %s226
      %p235 = scmp.eq.s32.totalorder %s26, 0
      %p236 = por %p234, %p235
      %p237 = scmp.ne.s32.totalorder %s225, %s226
      %p238 = scmp.eq.s32.totalorder %s27, 1
      %p239 = por %p237, %p238
      %p241 = scmp.ne.s32.totalorder %s226, %s240
      %p242 = scmp.eq.s32.totalorder %s27, 0
      %p243 = por %p241, %p242
      %s245 = sadd.s32 %s244, 1
      %p248 = scmp.eq.s32.totalorder %s21, 1
      %p249 = scmp.ne.s32.totalorder %s244, %s246
      %p250 = scmp.eq.s32.totalorder %s21, 0
      %p251 = por %p249, %p250
      %p252 = scmp.ne.s32.totalorder %s244, %s246
      %p253 = scmp.eq.s32.totalorder %s26, 1
      %p254 = por %p252, %p253
      %p255 = scmp.ne.s32.totalorder %s246, %s247
      %p256 = scmp.eq.s32.totalorder %s26, 0
      %p257 = por %p255, %p256
      %p258 = scmp.ne.s32.totalorder %s246, %s247
      %p259 = scmp.eq.s32.totalorder %s27, 1
      %p260 = por %p258, %p259
      %p262 = scmp.ne.s32.totalorder %s247, %s261
      %p263 = scmp.eq.s32.totalorder %s27, 0
      %p264 = por %p262, %p263
      %s265 = ssub.s32 %s21, %s28
      %p266 = scmp.eq.s32.totalorder %s265, 0
      %s268 = sadd.s32 %s267, 1
      %s269 = scalar_select %p266, %s267, %s268
      %p272 = pneg %p266
      %p273 = scmp.eq.s32.totalorder %s21, 1
      %p274 = por %p272, %p273
      %p275 = scmp.ne.s32.totalorder %s267, %s270
      %p276 = scmp.eq.s32.totalorder %s21, 0
      %p277 = por %p275, %p276
      %p278 = scmp.ne.s32.totalorder %s267, %s270
      %p279 = scmp.eq.s32.totalorder %s26, 1
      %p280 = por %p278, %p279
      %p281 = scmp.ne.s32.totalorder %s270, %s271
      %p282 = scmp.eq.s32.totalorder %s26, 0
      %p283 = por %p281, %p282
      %p284 = scmp.ne.s32.totalorder %s270, %s271
      %p285 = scmp.eq.s32.totalorder %s27, 1
      %p286 = por %p284, %p285
      %p288 = scmp.ne.s32.totalorder %s271, %s287
      %p289 = scmp.eq.s32.totalorder %s27, 0
      %p290 = por %p288, %p289
      %p291 = scmp.le.s32.totalorder 1, %s21
      %p292 = scmp.lt.s32.totalorder %s21, 3
      %p293 = pnand %p291, %p292
      %p294 = pneg %p293
      // Predicated region
      $region9: #{urdmu_forward.1} parent=5 // pred_check
        _
      $region10: #{urdmu_forward.1} parent=5 // pred_check_branch
        %296 = sbr.rel (%p293) target = $region12
      $region11: #{urdmu_forward.1} parent=5 // pred_region
        %s297 = ssub.s32 %s21, 1
        // Predicated region
        $region13: #{urdmu_forward.1} parent=11 // pred_check
          %p298 = pneg %p68
        $region14: #{urdmu_forward.1} parent=11 // pred_check_branch
          %300 = sbr.rel (%p298) target = $region16
        $region15: #{urdmu_forward.1} parent=11 // pred_region
          _
        $region16: #{urdmu_forward.1} parent=11 // pred_fallthru
          _
        // Predicated region
        $region17: #{urdmu_forward.1} parent=11 // pred_check
          %p301 = pneg %p89
        $region18: #{urdmu_forward.1} parent=11 // pred_check_branch
          %303 = sbr.rel (%p301) target = $region20
        $region19: #{urdmu_forward.1} parent=11 // pred_region
          _
        $region20: #{urdmu_forward.1} parent=11 // pred_fallthru
          _
        // Predicated region
        $region21: #{urdmu_forward.1} parent=11 // pred_check
          %p304 = pneg %p110
        $region22: #{urdmu_forward.1} parent=11 // pred_check_branch
          %306 = sbr.rel (%p304) target = $region24
        $region23: #{urdmu_forward.1} parent=11 // pred_region
          _
        $region24: #{urdmu_forward.1} parent=11 // pred_fallthru
          _
        // Predicated region
        $region25: #{urdmu_forward.1} parent=11 // pred_check
          %p307 = pneg %p131
        $region26: #{urdmu_forward.1} parent=11 // pred_check_branch
          %309 = sbr.rel (%p307) target = $region28
        $region27: #{urdmu_forward.1} parent=11 // pred_region
          _
        $region28: #{urdmu_forward.1} parent=11 // pred_fallthru
          _
        // Predicated region
        $region29: #{urdmu_forward.1} parent=11 // pred_check
          %p310 = pneg %p152
        $region30: #{urdmu_forward.1} parent=11 // pred_check_branch
          %312 = sbr.rel (%p310) target = $region32
        $region31: #{urdmu_forward.1} parent=11 // pred_region
          _
        $region32: #{urdmu_forward.1} parent=11 // pred_fallthru
          _
        // Predicated region
        $region33: #{urdmu_forward.1} parent=11 // pred_check
          %p313 = pneg %p173
        $region34: #{urdmu_forward.1} parent=11 // pred_check_branch
          %315 = sbr.rel (%p313) target = $region36
        $region35: #{urdmu_forward.1} parent=11 // pred_region
          _
        $region36: #{urdmu_forward.1} parent=11 // pred_fallthru
          _
        // Predicated region
        $region37: #{urdmu_forward.1} parent=11 // pred_check
          %p316 = pneg %p194
        $region38: #{urdmu_forward.1} parent=11 // pred_check_branch
          %318 = sbr.rel (%p316) target = $region40
        $region39: #{urdmu_forward.1} parent=11 // pred_region
          _
        $region40: #{urdmu_forward.1} parent=11 // pred_fallthru
          _
        // Predicated region
        $region41: #{urdmu_forward.1} parent=11 // pred_check
          %p319 = pneg %p215
        $region42: #{urdmu_forward.1} parent=11 // pred_check_branch
          %321 = sbr.rel (%p319) target = $region44
        $region43: #{urdmu_forward.1} parent=11 // pred_region
          _
        $region44: #{urdmu_forward.1} parent=11 // pred_fallthru
          _
        // Predicated region
        $region45: #{urdmu_forward.1} parent=11 // pred_check
          %p322 = pneg %p236
        $region46: #{urdmu_forward.1} parent=11 // pred_check_branch
          %324 = sbr.rel (%p322) target = $region48
        $region47: #{urdmu_forward.1} parent=11 // pred_region
          _
        $region48: #{urdmu_forward.1} parent=11 // pred_fallthru
          _
        // Predicated region
        $region49: #{urdmu_forward.1} parent=11 // pred_check
          %p325 = pneg %p257
        $region50: #{urdmu_forward.1} parent=11 // pred_check_branch
          %327 = sbr.rel (%p325) target = $region52
        $region51: #{urdmu_forward.1} parent=11 // pred_region
          _
        $region52: #{urdmu_forward.1} parent=11 // pred_fallthru
          _
      $region12: #{urdmu_forward.1} parent=5 // pred_fallthru
        _
      %p328 = scmp.lt.s32.totalorder %s21, 2
      // Predicated region
      $region53: #{urdmu_forward.1} parent=5 // pred_check
        %p329 = pneg %p328
      $region54: #{urdmu_forward.1} parent=5 // pred_check_branch
        %331 = sbr.rel (%p329) target = $region56
      $region55: #{urdmu_forward.1} parent=5 // pred_region
        // Predicated region
        $region57: #{urdmu_forward.1} parent=55 // pred_check
          %p332 = pneg %p41
        $region58: #{urdmu_forward.1} parent=55 // pred_check_branch
          %334 = sbr.rel (%p332) target = $region60
        $region59: #{urdmu_forward.1} parent=55 // pred_region
          %p335 = scmp.lt.s32.totalorder %s21, 1
          %s336 = scalar_select %p335, %s21, 1
          %s337 = smul.addr %s336, 4
          %s338 = smul.addr %s337, 4
          %s339 = scalar_lea.vmem %s0, %s338
        $region60: #{urdmu_forward.1} parent=55 // pred_fallthru
          _
      $region56: #{urdmu_forward.1} parent=5 // pred_fallthru
        _
      %p340 = scmp.le.s32.totalorder 1, %s21
      %p341 = scmp.lt.s32.totalorder %s21, 3
      %p342 = pnand %p340, %p341
      %p343 = pneg %p342
      // Predicated region
      $region61: #{urdmu_forward.1} parent=5 // pred_check
        _
      $region62: #{urdmu_forward.1} parent=5 // pred_check_branch
        %345 = sbr.rel (%p342) target = $region64
      $region63: #{urdmu_forward.1} parent=5 // pred_region
        %s346 = ssub.s32 %s21, 1
        %p347 = scmp.lt.s32.totalorder %s26, 1
        %s348 = scalar_select %p347, %s26, 1
        %s349 = smul.addr %s348, 4
        %s350 = smul.addr %s349, 4
        %s351 = scalar_lea.vmem %s0, %s350
        %p352 = pneg %p47
        %p353 = pneg %p44
        %p354 = pneg %p68
        %p355 = pneg %p65
        %p356 = pneg %p89
        %p357 = pneg %p86
        %p358 = pneg %p110
        %p359 = pneg %p107
        %p360 = pneg %p131
        %p361 = pneg %p128
        %p362 = pneg %p152
        %p363 = pneg %p149
        %p364 = pneg %p173
        %p365 = pneg %p170
        %p366 = pneg %p194
        %p367 = pneg %p191
        %p368 = pneg %p215
        %p369 = pneg %p212
        %p370 = pneg %p236
        %p371 = pneg %p233
        %p372 = pneg %p257
        %p373 = pneg %p254
        %p374 = pneg %p283
        %p375 = pneg %p280
        %s376 = sand.u32 %s270, 1
        %s377 = scalar_lea.sflag [#allocation4], %s376
        %s378 = sand.u32 %s270, 1
        %s379 = scalar_lea.vmem [#allocation3], %s378
        %p380 = scmp.lt.s32.totalorder %s26, 1
        %s381 = scalar_select %p380, %s26, 1
        %s382 = smul.addr %s381, 4
        %s383 = smul.addr %s382, 4
        %s384 = scalar_lea.vmem %s0, %s383
        %v386 = vld [vmem:[%s384] sm:$0xff]
        %v387 = vld [vmem:[%s384 + $0x8] sm:$0xff]
        %v388 = vld [vmem:[%s1] sm:$0xff]
        %v389 = vld [vmem:[%s1 + $0x8] sm:$0xff]
        %v390 = vld [vmem:[%s1 + $0x10] sm:$0xff]
        %v391 = vld [vmem:[%s1 + $0x18] sm:$0xff]
        %v392 = vld [vmem:[%s1 + $0x20] sm:$0xff]
        %v393 = vld [vmem:[%s1 + $0x28] sm:$0xff]
        %v394 = vld [vmem:[%s1 + $0x30] sm:$0xff]
        %v395 = vld [vmem:[%s1 + $0x38] sm:$0xff]
        %v396 = vld [vmem:[%s1 + $0x40] sm:$0xff]
        %v397 = vld [vmem:[%s1 + $0x48] sm:$0xff]
        %v398 = vld [vmem:[%s1 + $0x50] sm:$0xff]
        %v399 = vld [vmem:[%s1 + $0x58] sm:$0xff]
        %v400 = vld [vmem:[%s1 + $0x60] sm:$0xff]
        %v401 = vld [vmem:[%s1 + $0x68] sm:$0xff]
        %v402 = vld [vmem:[%s1 + $0x70] sm:$0xff]
        %v403 = vld [vmem:[%s1 + $0x78] sm:$0xff]
        %v404 = vld [vmem:[%s1 + $0x80] sm:$0xff]
        %v405 = vld [vmem:[%s1 + $0x88] sm:$0xff]
        %v406 = vld [vmem:[%s1 + $0x90] sm:$0xff]
        %v407 = vld [vmem:[%s1 + $0x98] sm:$0xff]
        %v408 = vld [vmem:[%s1 + $0xa0] sm:$0xff]
        %v409 = vld [vmem:[%s1 + $0xa8] sm:$0xff]
        %v410 = vld [vmem:[%s1 + $0xb0] sm:$0xff]
        %v411 = vld [vmem:[%s1 + $0xb8] sm:$0xff]
        %v412 = vld [vmem:[%s1 + $0xc0] sm:$0xff]
        %v413 = vld [vmem:[%s1 + $0xc8] sm:$0xff]
        %v414 = vld [vmem:[%s1 + $0xd0] sm:$0xff]
        %v415 = vld [vmem:[%s1 + $0xd8] sm:$0xff]
        %v416 = vld [vmem:[%s1 + $0xe0] sm:$0xff]
        %v417 = vld [vmem:[%s1 + $0xe8] sm:$0xff]
        %v418 = vld [vmem:[%s1 + $0xf0] sm:$0xff]
        %v419 = vld [vmem:[%s1 + $0xf8] sm:$0xff]
        %v420 = vld [vmem:[%s1 + $0x100] sm:$0xff]
        %v421 = vld [vmem:[%s1 + $0x108] sm:$0xff]
        %v422 = vld [vmem:[%s1 + $0x110] sm:$0xff]
        %v423 = vld [vmem:[%s1 + $0x118] sm:$0xff]
        %v424 = vld [vmem:[%s1 + $0x120] sm:$0xff]
        %v425 = vld [vmem:[%s1 + $0x128] sm:$0xff]
        %v426 = vld [vmem:[%s1 + $0x130] sm:$0xff]
        %v427 = vld [vmem:[%s1 + $0x138] sm:$0xff]
        %v428 = vld [vmem:[%s1 + $0x140] sm:$0xff]
        %v429 = vld [vmem:[%s1 + $0x148] sm:$0xff]
        %v430 = vld [vmem:[%s1 + $0x150] sm:$0xff]
        %v431 = vld [vmem:[%s1 + $0x158] sm:$0xff]
        %v432 = vld [vmem:[%s1 + $0x160] sm:$0xff]
        %v433 = vld [vmem:[%s1 + $0x168] sm:$0xff]
        %v434 = vld [vmem:[%s1 + $0x170] sm:$0xff]
        %v435 = vld [vmem:[%s1 + $0x178] sm:$0xff]
        %v436 = vld [vmem:[%s2] sm:$0xf]
        %v438 = vlaneseq
        %v439 = vshrl.u32 %v438, 7
        %v440 = vsub.s32 0, %v439
        %v441 = vrot.slane %v436, %v440
        %v442 = vlaneseq
        %v443 = vshrl.u32 %v442, 7
        %v444 = vsub.s32 1, %v443
        %v445 = vrot.slane %v436, %v444
        %v446 = vlaneseq
        %v447 = vshrl.u32 %v446, 7
        %v448 = vsub.s32 2, %v447
        %v449 = vrot.slane %v436, %v448
        %v450 = vlaneseq
        %v451 = vshrl.u32 %v450, 7
        %v452 = vsub.s32 3, %v451
        %v453 = vrot.slane %v436, %v452
        %v460 = vunpack.c.l.b16 %v386
        %v461 = vunpack.c.h.b16 %v386
        %v462 = vunpack.c.l.b16 %v387
        %v463 = vunpack.c.h.b16 %v387
        %v464 = vpack.c.b16 %v462, %v460
        %v465 = vpack.c.b16 %v463, %v461
        %v515 = vunpack.c.l.b16 %v388
        %v516 = vunpack.c.h.b16 %v388
        %v517 = vunpack.c.l.b16 %v389
        %v518 = vunpack.c.h.b16 %v389
        %v519 = vunpack.c.l.b16 %v390
        %v520 = vunpack.c.h.b16 %v390
        %v521 = vunpack.c.l.b16 %v391
        %v522 = vunpack.c.h.b16 %v391
        %v523 = vunpack.c.l.b16 %v392
        %v524 = vunpack.c.h.b16 %v392
        %v525 = vunpack.c.l.b16 %v393
        %v526 = vunpack.c.h.b16 %v393
        %v527 = vunpack.c.l.b16 %v394
        %v528 = vunpack.c.h.b16 %v394
        %v529 = vunpack.c.l.b16 %v395
        %v530 = vunpack.c.h.b16 %v395
        %v531 = vunpack.c.l.b16 %v396
        %v532 = vunpack.c.h.b16 %v396
        %v533 = vunpack.c.l.b16 %v397
        %v534 = vunpack.c.h.b16 %v397
        %v535 = vunpack.c.l.b16 %v398
        %v536 = vunpack.c.h.b16 %v398
        %v537 = vunpack.c.l.b16 %v399
        %v538 = vunpack.c.h.b16 %v399
        %v539 = vunpack.c.l.b16 %v400
        %v540 = vunpack.c.h.b16 %v400
        %v541 = vunpack.c.l.b16 %v401
        %v542 = vunpack.c.h.b16 %v401
        %v543 = vunpack.c.l.b16 %v402
        %v544 = vunpack.c.h.b16 %v402
        %v545 = vunpack.c.l.b16 %v403
        %v546 = vunpack.c.h.b16 %v403
        %v547 = vunpack.c.l.b16 %v404
        %v548 = vunpack.c.h.b16 %v404
        %v549 = vunpack.c.l.b16 %v405
        %v550 = vunpack.c.h.b16 %v405
        %v551 = vunpack.c.l.b16 %v406
        %v552 = vunpack.c.h.b16 %v406
        %v553 = vunpack.c.l.b16 %v407
        %v554 = vunpack.c.h.b16 %v407
        %v555 = vunpack.c.l.b16 %v408
        %v556 = vunpack.c.h.b16 %v408
        %v557 = vunpack.c.l.b16 %v409
        %v558 = vunpack.c.h.b16 %v409
        %v559 = vunpack.c.l.b16 %v410
        %v560 = vunpack.c.h.b16 %v410
        %v561 = vunpack.c.l.b16 %v411
        %v562 = vunpack.c.h.b16 %v411
        %v563 = vunpack.c.l.b16 %v412
        %v564 = vunpack.c.h.b16 %v412
        %v565 = vunpack.c.l.b16 %v413
        %v566 = vunpack.c.h.b16 %v413
        %v567 = vunpack.c.l.b16 %v414
        %v568 = vunpack.c.h.b16 %v414
        %v569 = vunpack.c.l.b16 %v415
        %v570 = vunpack.c.h.b16 %v415
        %v571 = vunpack.c.l.b16 %v416
        %v572 = vunpack.c.h.b16 %v416
        %v573 = vunpack.c.l.b16 %v417
        %v574 = vunpack.c.h.b16 %v417
        %v575 = vunpack.c.l.b16 %v418
        %v576 = vunpack.c.h.b16 %v418
        %v577 = vunpack.c.l.b16 %v419
        %v578 = vunpack.c.h.b16 %v419
        %v579 = vunpack.c.l.b16 %v420
        %v580 = vunpack.c.h.b16 %v420
        %v581 = vunpack.c.l.b16 %v421
        %v582 = vunpack.c.h.b16 %v421
        %v583 = vunpack.c.l.b16 %v422
        %v584 = vunpack.c.h.b16 %v422
        %v585 = vunpack.c.l.b16 %v423
        %v586 = vunpack.c.h.b16 %v423
        %v587 = vunpack.c.l.b16 %v424
        %v588 = vunpack.c.h.b16 %v424
        %v589 = vunpack.c.l.b16 %v425
        %v590 = vunpack.c.h.b16 %v425
        %v591 = vunpack.c.l.b16 %v426
        %v592 = vunpack.c.h.b16 %v426
        %v593 = vunpack.c.l.b16 %v427
        %v594 = vunpack.c.h.b16 %v427
        %v595 = vunpack.c.l.b16 %v428
        %v596 = vunpack.c.h.b16 %v428
        %v597 = vunpack.c.l.b16 %v429
        %v598 = vunpack.c.h.b16 %v429
        %v599 = vunpack.c.l.b16 %v430
        %v600 = vunpack.c.h.b16 %v430
        %v601 = vunpack.c.l.b16 %v431
        %v602 = vunpack.c.h.b16 %v431
        %v603 = vunpack.c.l.b16 %v432
        %v604 = vunpack.c.h.b16 %v432
        %v605 = vunpack.c.l.b16 %v433
        %v606 = vunpack.c.h.b16 %v433
        %v607 = vunpack.c.l.b16 %v434
        %v608 = vunpack.c.h.b16 %v434
        %v609 = vunpack.c.l.b16 %v435
        %v610 = vunpack.c.h.b16 %v435
        %v611 = vpack.c.b16 %v519, %v515
        %v612 = vpack.c.b16 %v520, %v516
        %v613 = vpack.c.b16 %v521, %v517
        %v614 = vpack.c.b16 %v522, %v518
        %v615 = vpack.c.b16 %v527, %v523
        %v616 = vpack.c.b16 %v528, %v524
        %v617 = vpack.c.b16 %v529, %v525
        %v618 = vpack.c.b16 %v530, %v526
        %v619 = vpack.c.b16 %v535, %v531
        %v620 = vpack.c.b16 %v536, %v532
        %v621 = vpack.c.b16 %v537, %v533
        %v622 = vpack.c.b16 %v538, %v534
        %v623 = vpack.c.b16 %v543, %v539
        %v624 = vpack.c.b16 %v544, %v540
        %v625 = vpack.c.b16 %v545, %v541
        %v626 = vpack.c.b16 %v546, %v542
        %v627 = vpack.c.b16 %v551, %v547
        %v628 = vpack.c.b16 %v552, %v548
        %v629 = vpack.c.b16 %v553, %v549
        %v630 = vpack.c.b16 %v554, %v550
        %v631 = vpack.c.b16 %v559, %v555
        %v632 = vpack.c.b16 %v560, %v556
        %v633 = vpack.c.b16 %v561, %v557
        %v634 = vpack.c.b16 %v562, %v558
        %v635 = vpack.c.b16 %v567, %v563
        %v636 = vpack.c.b16 %v568, %v564
        %v637 = vpack.c.b16 %v569, %v565
        %v638 = vpack.c.b16 %v570, %v566
        %v639 = vpack.c.b16 %v575, %v571
        %v640 = vpack.c.b16 %v576, %v572
        %v641 = vpack.c.b16 %v577, %v573
        %v642 = vpack.c.b16 %v578, %v574
        %v643 = vpack.c.b16 %v583, %v579
        %v644 = vpack.c.b16 %v584, %v580
        %v645 = vpack.c.b16 %v585, %v581
        %v646 = vpack.c.b16 %v586, %v582
        %v647 = vpack.c.b16 %v591, %v587
        %v648 = vpack.c.b16 %v592, %v588
        %v649 = vpack.c.b16 %v593, %v589
        %v650 = vpack.c.b16 %v594, %v590
        %v651 = vpack.c.b16 %v599, %v595
        %v652 = vpack.c.b16 %v600, %v596
        %v653 = vpack.c.b16 %v601, %v597
        %v654 = vpack.c.b16 %v602, %v598
        %v655 = vpack.c.b16 %v607, %v603
        %v656 = vpack.c.b16 %v608, %v604
        %v657 = vpack.c.b16 %v609, %v605
        %v658 = vpack.c.b16 %v610, %v606
        %vm707 = vcmask 523264
        %v709 = vsel %vm707, %v465, 0
        %711 = vmatprep.subr.bf16.mxu0 %v612
        %712 = vmatpush1.bf16.msra.mxu0 %v611
        %713 = vmatprep.subr.bf16.mxu0 %v616
        %714 = vmatpush1.bf16.msra.mxu0 %v615
        %715 = vmatprep.subr.bf16.mxu0 %v620
        %716 = vmatpush1.bf16.msra.mxu0 %v619
        %717 = vmatprep.subr.bf16.mxu0 %v624
        %718 = vmatpush1.bf16.msra.mxu0 %v623
        %719 = vmatprep.subr.bf16.mxu0 %v628
        %720 = vmatpush1.bf16.msra.mxu0 %v627
        %721 = vmatprep.subr.bf16.mxu0 %v632
        %722 = vmatpush1.bf16.msra.mxu0 %v631
        %723 = vmatprep.subr.bf16.mxu0 %v636
        %724 = vmatpush1.bf16.msra.mxu0 %v635
        %725 = vmatprep.subr.bf16.mxu0 %v640
        %726 = vmatpush1.bf16.msra.mxu0 %v639
        %727 = vmatprep.subr.bf16.mxu0 %v644
        %728 = vmatpush1.bf16.msra.mxu0 %v643
        %729 = vmatprep.subr.bf16.mxu0 %v648
        %730 = vmatpush1.bf16.msra.mxu0 %v647
        %731 = vmatprep.subr.bf16.mxu0 %v652
        %732 = vmatpush1.bf16.msra.mxu0 %v651
        %733 = vmatprep.subr.bf16.mxu0 %v656
        %734 = vmatpush1.bf16.msra.mxu0 %v655
        %735 = vmatprep.subr.bf16.mxu0 0
        %736 = vmatpush1.bf16.msra.mxu0 0
        %737 = vmatprep.subr.bf16.mxu0 0
        %738 = vmatpush1.bf16.msra.mxu0 0
        %739 = vmatprep.subr.bf16.mxu0 0
        %740 = vmatpush1.bf16.msra.mxu0 0
        %741 = vmatprep.subr.bf16.mxu0 0
        %742 = vmatpush1.bf16.msra.mxu0 0
        %743 = vmatprep.mubr.bf16.mxu0 %v709
        %744 = vmatmul.mubr.bf16.gmra.mrb[0].mxu0 %v464
        %v745 = vpop.f32.mrb[0].mxu0
        %v746 = vadd.f32 %v441, %v745
        %v747 = vpop.f32.mrb[0].mxu0
        %v748 = vadd.f32 %v445, %v747
        %v749 = vpop.f32.mrb[0].mxu0
        %v750 = vadd.f32 %v441, %v749
        %v751 = vpop.f32.mrb[0].mxu0
        %v752 = vadd.f32 %v445, %v751
        %753 = vdwg.mxu0
        %754 = vmatprep.subr.bf16.mxu0 %v614
        %755 = vmatpush1.bf16.msra.mxu0 %v613
        %756 = vmatprep.subr.bf16.mxu0 %v618
        %757 = vmatpush1.bf16.msra.mxu0 %v617
        %758 = vmatprep.subr.bf16.mxu0 %v622
        %759 = vmatpush1.bf16.msra.mxu0 %v621
        %760 = vmatprep.subr.bf16.mxu0 %v626
        %761 = vmatpush1.bf16.msra.mxu0 %v625
        %762 = vmatprep.subr.bf16.mxu0 %v630
        %763 = vmatpush1.bf16.msra.mxu0 %v629
        %764 = vmatprep.subr.bf16.mxu0 %v634
        %765 = vmatpush1.bf16.msra.mxu0 %v633
        %766 = vmatprep.subr.bf16.mxu0 %v638
        %767 = vmatpush1.bf16.msra.mxu0 %v637
        %768 = vmatprep.subr.bf16.mxu0 %v642
        %769 = vmatpush1.bf16.msra.mxu0 %v641
        %770 = vmatprep.subr.bf16.mxu0 %v646
        %771 = vmatpush1.bf16.msra.mxu0 %v645
        %772 = vmatprep.subr.bf16.mxu0 %v650
        %773 = vmatpush1.bf16.msra.mxu0 %v649
        %774 = vmatprep.subr.bf16.mxu0 %v654
        %775 = vmatpush1.bf16.msra.mxu0 %v653
        %776 = vmatprep.subr.bf16.mxu0 %v658
        %777 = vmatpush1.bf16.msra.mxu0 %v657
        %778 = vmatprep.subr.bf16.mxu0 0
        %779 = vmatpush1.bf16.msra.mxu0 0
        %780 = vmatprep.subr.bf16.mxu0 0
        %781 = vmatpush1.bf16.msra.mxu0 0
        %782 = vmatprep.subr.bf16.mxu0 0
        %783 = vmatpush1.bf16.msra.mxu0 0
        %784 = vmatprep.subr.bf16.mxu0 0
        %785 = vmatpush1.bf16.msra.mxu0 0
        %786 = vmatprep.mubr.bf16.mxu0 %v709
        %787 = vmatmul.mubr.bf16.gmra.mrb[0].mxu0 %v464
        %v788 = vpop.f32.mrb[0].mxu0
        %v789 = vadd.f32 %v449, %v788
        %v790 = vpop.f32.mrb[0].mxu0
        %v791 = vadd.f32 %v453, %v790
        %v792 = vpop.f32.mrb[0].mxu0
        %v793 = vadd.f32 %v449, %v792
        %v794 = vpop.f32.mrb[0].mxu0
        %v795 = vadd.f32 %v453, %v794
        %796 = vdwg.mxu0
        %v797 = vmax.f32 %v746, 0.0
        %v798 = vmax.f32 %v748, 0.0
        %v799 = vmax.f32 %v789, 0.0
        %v800 = vmax.f32 %v791, 0.0
        %v801 = vmax.f32 %v750, 0.0
        %v802 = vmax.f32 %v752, 0.0
        %v803 = vmax.f32 %v793, 0.0
        %v804 = vmax.f32 %v795, 0.0
        %v805 = vpack.c.bf16 %v801, %v797
        %v806 = vpack.c.bf16 %v802, %v798
        %v807 = vpack.c.bf16 %v803, %v799
        %v808 = vpack.c.bf16 %v804, %v800
        %v809 = vld [vmem:[%s3] sm:$0xff]
        %v810 = vld [vmem:[%s3 + $0x8] sm:$0xff]
        %v811 = vld [vmem:[%s3 + $0x10] sm:$0xff]
        %v812 = vld [vmem:[%s3 + $0x18] sm:$0xff]
        %v813 = vld [vmem:[%s3 + $0x20] sm:$0xff]
        %v814 = vld [vmem:[%s3 + $0x28] sm:$0xff]
        %v815 = vld [vmem:[%s3 + $0x30] sm:$0xff]
        %v816 = vld [vmem:[%s3 + $0x38] sm:$0xff]
        %v825 = vunpack.c.l.b16 %v809
        %v826 = vunpack.c.h.b16 %v809
        %v827 = vunpack.c.l.b16 %v810
        %v828 = vunpack.c.h.b16 %v810
        %v829 = vunpack.c.l.b16 %v811
        %v830 = vunpack.c.h.b16 %v811
        %v831 = vunpack.c.l.b16 %v812
        %v832 = vunpack.c.h.b16 %v812
        %v833 = vunpack.c.l.b16 %v813
        %v834 = vunpack.c.h.b16 %v813
        %v835 = vunpack.c.l.b16 %v814
        %v836 = vunpack.c.h.b16 %v814
        %v837 = vunpack.c.l.b16 %v815
        %v838 = vunpack.c.h.b16 %v815
        %v839 = vunpack.c.l.b16 %v816
        %v840 = vunpack.c.h.b16 %v816
        %v841 = vpack.c.b16 %v829, %v825
        %v842 = vpack.c.b16 %v830, %v826
        %v843 = vpack.c.b16 %v831, %v827
        %v844 = vpack.c.b16 %v832, %v828
        %v845 = vpack.c.b16 %v837, %v833
        %v846 = vpack.c.b16 %v838, %v834
        %v847 = vpack.c.b16 %v839, %v835
        %v848 = vpack.c.b16 %v840, %v836
        %857 = vmatprep.subr.bf16.mxu0 %v842
        %858 = vmatpush1.bf16.xpose.msra.mxu0 %v841
        %859 = vmatprep.subr.bf16.mxu0 %v846
        %860 = vmatpush1.bf16.xpose.msra.mxu0 %v845
        %861 = vmatprep.subr.bf16.mxu0 0
        %862 = vmatpush1.bf16.xpose.msra.mxu0 0
        %863 = vmatprep.subr.bf16.mxu0 0
        %864 = vmatpush1.bf16.xpose.msra.mxu0 0
        %865 = vmatprep.subr.bf16.mxu0 0
        %866 = vmatpush1.bf16.xpose.msra.mxu0 0
        %867 = vmatprep.subr.bf16.mxu0 0
        %868 = vmatpush1.bf16.xpose.msra.mxu0 0
        %869 = vmatprep.subr.bf16.mxu0 0
        %870 = vmatpush1.bf16.xpose.msra.mxu0 0
        %871 = vmatprep.subr.bf16.mxu0 0
        %872 = vmatpush1.bf16.xpose.msra.mxu0 0
        %873 = vmatprep.subr.bf16.mxu0 0
        %874 = vmatpush1.bf16.xpose.msra.mxu0 0
        %875 = vmatprep.subr.bf16.mxu0 0
        %876 = vmatpush1.bf16.xpose.msra.mxu0 0
        %877 = vmatprep.subr.bf16.mxu0 0
        %878 = vmatpush1.bf16.xpose.msra.mxu0 0
        %879 = vmatprep.subr.bf16.mxu0 0
        %880 = vmatpush1.bf16.xpose.msra.mxu0 0
        %881 = vmatprep.subr.bf16.mxu0 0
        %882 = vmatpush1.bf16.xpose.msra.mxu0 0
        %883 = vmatprep.subr.bf16.mxu0 0
        %884 = vmatpush1.bf16.xpose.msra.mxu0 0
        %885 = vmatprep.subr.bf16.mxu0 0
        %886 = vmatpush1.bf16.xpose.msra.mxu0 0
        %887 = vmatprep.subr.bf16.mxu0 0
        %888 = vmatpush1.bf16.xpose.msra.mxu0 0
        %889 = vmatprep.mubr.bf16.mxu0 %v806
        %890 = vmatmul.mubr.bf16.gmra.mrb[0].mxu0 %v805
        %v891 = vpop.f32.mrb[0].mxu0
        %v892 = vadd.f32 0.0, %v891
        %v893 = vpop.f32.mrb[0].mxu0
        %v894 = vpop.f32.mrb[0].mxu0
        %v895 = vadd.f32 0.0, %v894
        %v896 = vpop.f32.mrb[0].mxu0
        %897 = vdwg.mxu0
        %898 = vmatprep.subr.bf16.mxu0 %v844
        %899 = vmatpush1.bf16.xpose.msra.mxu0 %v843
        %900 = vmatprep.subr.bf16.mxu0 %v848
        %901 = vmatpush1.bf16.xpose.msra.mxu0 %v847
        %902 = vmatprep.subr.bf16.mxu0 0
        %903 = vmatpush1.bf16.xpose.msra.mxu0 0
        %904 = vmatprep.subr.bf16.mxu0 0
        %905 = vmatpush1.bf16.xpose.msra.mxu0 0
        %906 = vmatprep.subr.bf16.mxu0 0
        %907 = vmatpush1.bf16.xpose.msra.mxu0 0
        %908 = vmatprep.subr.bf16.mxu0 0
        %909 = vmatpush1.bf16.xpose.msra.mxu0 0
        %910 = vmatprep.subr.bf16.mxu0 0
        %911 = vmatpush1.bf16.xpose.msra.mxu0 0
        %912 = vmatprep.subr.bf16.mxu0 0
        %913 = vmatpush1.bf16.xpose.msra.mxu0 0
        %914 = vmatprep.subr.bf16.mxu0 0
        %915 = vmatpush1.bf16.xpose.msra.mxu0 0
        %916 = vmatprep.subr.bf16.mxu0 0
        %917 = vmatpush1.bf16.xpose.msra.mxu0 0
        %918 = vmatprep.subr.bf16.mxu0 0
        %919 = vmatpush1.bf16.xpose.msra.mxu0 0
        %920 = vmatprep.subr.bf16.mxu0 0
        %921 = vmatpush1.bf16.xpose.msra.mxu0 0
        %922 = vmatprep.subr.bf16.mxu0 0
        %923 = vmatpush1.bf16.xpose.msra.mxu0 0
        %924 = vmatprep.subr.bf16.mxu0 0
        %925 = vmatpush1.bf16.xpose.msra.mxu0 0
        %926 = vmatprep.subr.bf16.mxu0 0
        %927 = vmatpush1.bf16.xpose.msra.mxu0 0
        %928 = vmatprep.subr.bf16.mxu0 0
        %929 = vmatpush1.bf16.xpose.msra.mxu0 0
        %930 = vmatprep.mubr.bf16.mxu0 %v808
        %931 = vmatmul.mubr.bf16.gmra.mrb[0].mxu0 %v807
        %v932 = vpop.f32.mrb[0].mxu0
        %v933 = vadd.f32 %v892, %v932
        %v934 = vpop.f32.mrb[0].mxu0
        %v935 = vpop.f32.mrb[0].mxu0
        %v936 = vadd.f32 %v895, %v935
        %v937 = vpop.f32.mrb[0].mxu0
        %938 = vdwg.mxu0
        %v939 = vmul.f32 %v933, 0.044194173
        %v940 = vmul.f32 %v936, 0.044194173
        %v941 = vxor.u32 %v939, 2147483648
        %v942 = vxor.u32 %v940, 2147483648
        %v943 = vmul.f32 %v941, 1.442695
        %v944 = vpow.pop %v943
        %v945 = vmul.f32 %v942, 1.442695
        %v946 = vpow.pop %v945
        %v947 = vadd.f32 %v944, 1.0
        %v948 = vadd.f32 %v946, 1.0
        %v949 = vrcp.pop %v947
        %v950 = vmul.f32 1.0, %v949
        %v951 = vrcp.pop %v948
        %v952 = vmul.f32 1.0, %v951
        %v953 = vpack.c.bf16 %v952, %v950
        %vm954 = vcmask 261120
        %v956 = vsel %vm954, %v953, 0
        %958 = vmatprep.subr.bf16.mxu0 %v842
        %959 = vmatpush1.bf16.msra.mxu0 %v841
        %960 = vmatprep.subr.bf16.mxu0 %v846
        %961 = vmatpush1.bf16.msra.mxu0 %v845
        %962 = vmatprep.subr.bf16.mxu0 0
        %963 = vmatpush1.bf16.msra.mxu0 0
        %964 = vmatprep.subr.bf16.mxu0 0
        %965 = vmatpush1.bf16.msra.mxu0 0
        %966 = vmatprep.subr.bf16.mxu0 0
        %967 = vmatpush1.bf16.msra.mxu0 0
        %968 = vmatprep.subr.bf16.mxu0 0
        %969 = vmatpush1.bf16.msra.mxu0 0
        %970 = vmatprep.subr.bf16.mxu0 0
        %971 = vmatpush1.bf16.msra.mxu0 0
        %972 = vmatprep.subr.bf16.mxu0 0
        %973 = vmatpush1.bf16.msra.mxu0 0
        %974 = vmatprep.subr.bf16.mxu0 0
        %975 = vmatpush1.bf16.msra.mxu0 0
        %976 = vmatprep.subr.bf16.mxu0 0
        %977 = vmatpush1.bf16.msra.mxu0 0
        %978 = vmatprep.subr.bf16.mxu0 0
        %979 = vmatpush1.bf16.msra.mxu0 0
        %980 = vmatprep.subr.bf16.mxu0 0
        %981 = vmatpush1.bf16.msra.mxu0 0
        %982 = vmatprep.subr.bf16.mxu0 0
        %983 = vmatpush1.bf16.msra.mxu0 0
        %984 = vmatprep.subr.bf16.mxu0 0
        %985 = vmatpush1.bf16.msra.mxu0 0
        %986 = vmatprep.subr.bf16.mxu0 0
        %987 = vmatpush1.bf16.msra.mxu0 0
        %988 = vmatprep.subr.bf16.mxu0 0
        %989 = vmatpush1.bf16.msra.mxu0 0
        %990 = vmatprep.mubr.bf16.mxu0 0
        %991 = vmatmul.mubr.bf16.gmra.mrb[0].mxu0 %v956
        %v992 = vpop.f32.mrb[0].mxu0
        %v993 = vadd.f32 0.0, %v992
        %v994 = vpop.f32.mrb[0].mxu0
        %v995 = vadd.f32 0.0, %v994
        %v996 = vpop.f32.mrb[0].mxu0
        %v997 = vadd.f32 0.0, %v996
        %v998 = vpop.f32.mrb[0].mxu0
        %v999 = vadd.f32 0.0, %v998
        %1000 = vdwg.mxu0
        %1001 = vmatprep.subr.bf16.mxu0 %v844
        %1002 = vmatpush1.bf16.msra.mxu0 %v843
        %1003 = vmatprep.subr.bf16.mxu0 %v848
        %1004 = vmatpush1.bf16.msra.mxu0 %v847
        %1005 = vmatprep.subr.bf16.mxu0 0
        %1006 = vmatpush1.bf16.msra.mxu0 0
        %1007 = vmatprep.subr.bf16.mxu0 0
        %1008 = vmatpush1.bf16.msra.mxu0 0
        %1009 = vmatprep.subr.bf16.mxu0 0
        %1010 = vmatpush1.bf16.msra.mxu0 0
        %1011 = vmatprep.subr.bf16.mxu0 0
        %1012 = vmatpush1.bf16.msra.mxu0 0
        %1013 = vmatprep.subr.bf16.mxu0 0
        %1014 = vmatpush1.bf16.msra.mxu0 0
        %1015 = vmatprep.subr.bf16.mxu0 0
        %1016 = vmatpush1.bf16.msra.mxu0 0
        %1017 = vmatprep.subr.bf16.mxu0 0
        %1018 = vmatpush1.bf16.msra.mxu0 0
        %1019 = vmatprep.subr.bf16.mxu0 0
        %1020 = vmatpush1.bf16.msra.mxu0 0
        %1021 = vmatprep.subr.bf16.mxu0 0
        %1022 = vmatpush1.bf16.msra.mxu0 0
        %1023 = vmatprep.subr.bf16.mxu0 0
        %1024 = vmatpush1.bf16.msra.mxu0 0
        %1025 = vmatprep.subr.bf16.mxu0 0
        %1026 = vmatpush1.bf16.msra.mxu0 0
        %1027 = vmatprep.subr.bf16.mxu0 0
        %1028 = vmatpush1.bf16.msra.mxu0 0
        %1029 = vmatprep.subr.bf16.mxu0 0
        %1030 = vmatpush1.bf16.msra.mxu0 0
        %1031 = vmatprep.subr.bf16.mxu0 0
        %1032 = vmatpush1.bf16.msra.mxu0 0
        %1033 = vmatprep.mubr.bf16.mxu0 0
        %1034 = vmatmul.mubr.bf16.gmra.mrb[0].mxu0 %v956
        %v1035 = vpop.f32.mrb[0].mxu0
        %v1036 = vadd.f32 0.0, %v1035
        %v1037 = vpop.f32.mrb[0].mxu0
        %v1038 = vadd.f32 0.0, %v1037
        %v1039 = vpop.f32.mrb[0].mxu0
        %v1040 = vadd.f32 0.0, %v1039
        %v1041 = vpop.f32.mrb[0].mxu0
        %v1042 = vadd.f32 0.0, %v1041
        %1043 = vdwg.mxu0
        %v1044 = vpack.c.bf16 %v997, %v993
        %v1045 = vpack.c.bf16 %v999, %v995
        %v1046 = vpack.c.bf16 %v1040, %v1036
        %v1047 = vpack.c.bf16 %v1042, %v1038
        %v1048 = vld [vmem:[%s4] sm:$0xff]
        %v1049 = vld [vmem:[%s4 + $0x8] sm:$0xff]
        %v1050 = vld [vmem:[%s4 + $0x10] sm:$0xff]
        %v1051 = vld [vmem:[%s4 + $0x18] sm:$0xff]
        %v1052 = vld [vmem:[%s4 + $0x20] sm:$0xff]
        %v1053 = vld [vmem:[%s4 + $0x28] sm:$0xff]
        %v1054 = vld [vmem:[%s4 + $0x30] sm:$0xff]
        %v1055 = vld [vmem:[%s4 + $0x38] sm:$0xff]
        %v1056 = vld [vmem:[%s4 + $0x40] sm:$0xff]
        %v1057 = vld [vmem:[%s4 + $0x48] sm:$0xff]
        %v1058 = vld [vmem:[%s4 + $0x50] sm:$0xff]
        %v1059 = vld [vmem:[%s4 + $0x58] sm:$0xff]
        %v1060 = vld [vmem:[%s4 + $0x60] sm:$0xff]
        %v1061 = vld [vmem:[%s4 + $0x68] sm:$0xff]
        %v1062 = vld [vmem:[%s4 + $0x70] sm:$0xff]
        %v1063 = vld [vmem:[%s4 + $0x78] sm:$0xff]
        %v1064 = vld [vmem:[%s4 + $0x80] sm:$0xff]
        %v1065 = vld [vmem:[%s4 + $0x88] sm:$0xff]
        %v1066 = vld [vmem:[%s4 + $0x90] sm:$0xff]
        %v1067 = vld [vmem:[%s4 + $0x98] sm:$0xff]
        %v1068 = vld [vmem:[%s4 + $0xa0] sm:$0xff]
        %v1069 = vld [vmem:[%s4 + $0xa8] sm:$0xff]
        %v1070 = vld [vmem:[%s4 + $0xb0] sm:$0xff]
        %v1071 = vld [vmem:[%s4 + $0xb8] sm:$0xff]
        %v1072 = vld [vmem:[%s4 + $0xc0] sm:$0xff]
        %v1073 = vld [vmem:[%s4 + $0xc8] sm:$0xff]
        %v1074 = vld [vmem:[%s4 + $0xd0] sm:$0xff]
        %v1075 = vld [vmem:[%s4 + $0xd8] sm:$0xff]
        %v1076 = vld [vmem:[%s4 + $0xe0] sm:$0xff]
        %v1077 = vld [vmem:[%s4 + $0xe8] sm:$0xff]
        %v1078 = vld [vmem:[%s4 + $0xf0] sm:$0xff]
        %v1079 = vld [vmem:[%s4 + $0xf8] sm:$0xff]
        %v1080 = vld [vmem:[%s4 + $0x100] sm:$0xff]
        %v1081 = vld [vmem:[%s4 + $0x108] sm:$0xff]
        %v1082 = vld [vmem:[%s4 + $0x110] sm:$0xff]
        %v1083 = vld [vmem:[%s4 + $0x118] sm:$0xff]
        %v1084 = vld [vmem:[%s4 + $0x120] sm:$0xff]
        %v1085 = vld [vmem:[%s4 + $0x128] sm:$0xff]
        %v1086 = vld [vmem:[%s4 + $0x130] sm:$0xff]
        %v1087 = vld [vmem:[%s4 + $0x138] sm:$0xff]
        %v1088 = vld [vmem:[%s4 + $0x140] sm:$0xff]
        %v1089 = vld [vmem:[%s4 + $0x148] sm:$0xff]
        %v1090 = vld [vmem:[%s4 + $0x150] sm:$0xff]
        %v1091 = vld [vmem:[%s4 + $0x158] sm:$0xff]
        %v1092 = vld [vmem:[%s4 + $0x160] sm:$0xff]
        %v1093 = vld [vmem:[%s4 + $0x168] sm:$0xff]
        %v1094 = vld [vmem:[%s4 + $0x170] sm:$0xff]
        %v1095 = vld [vmem:[%s4 + $0x178] sm:$0xff]
        %v1096 = vld [vmem:[%s4 + $0x180] sm:$0xff]
        %v1097 = vld [vmem:[%s4 + $0x188] sm:$0xff]
        %v1098 = vld [vmem:[%s4 + $0x190] sm:$0xff]
        %v1099 = vld [vmem:[%s4 + $0x198] sm:$0xff]
        %v1100 = vld [vmem:[%s4 + $0x1a0] sm:$0xff]
        %v1101 = vld [vmem:[%s4 + $0x1a8] sm:$0xff]
        %v1102 = vld [vmem:[%s4 + $0x1b0] sm:$0xff]
        %v1103 = vld [vmem:[%s4 + $0x1b8] sm:$0xff]
        %v1104 = vld [vmem:[%s4 + $0x1c0] sm:$0xff]
        %v1105 = vld [vmem:[%s4 + $0x1c8] sm:$0xff]
        %v1106 = vld [vmem:[%s4 + $0x1d0] sm:$0xff]
        %v1107 = vld [vmem:[%s4 + $0x1d8] sm:$0xff]
        %v1108 = vld [vmem:[%s4 + $0x1e0] sm:$0xff]
        %v1109 = vld [vmem:[%s4 + $0x1e8] sm:$0xff]
        %v1110 = vld [vmem:[%s4 + $0x1f0] sm:$0xff]
        %v1111 = vld [vmem:[%s4 + $0x1f8] sm:$0xff]
        %v1112 = vld [vmem:[%s4 + $0x200] sm:$0xff]
        %v1113 = vld [vmem:[%s4 + $0x208] sm:$0xff]
        %v1114 = vld [vmem:[%s4 + $0x210] sm:$0xff]
        %v1115 = vld [vmem:[%s4 + $0x218] sm:$0xff]
        %v1116 = vld [vmem:[%s4 + $0x220] sm:$0xff]
        %v1117 = vld [vmem:[%s4 + $0x228] sm:$0xff]
        %v1118 = vld [vmem:[%s4 + $0x230] sm:$0xff]
        %v1119 = vld [vmem:[%s4 + $0x238] sm:$0xff]
        %v1120 = vld [vmem:[%s4 + $0x240] sm:$0xff]
        %v1121 = vld [vmem:[%s4 + $0x248] sm:$0xff]
        %v1122 = vld [vmem:[%s4 + $0x250] sm:$0xff]
        %v1123 = vld [vmem:[%s4 + $0x258] sm:$0xff]
        %v1124 = vld [vmem:[%s4 + $0x260] sm:$0xff]
        %v1125 = vld [vmem:[%s4 + $0x268] sm:$0xff]
        %v1126 = vld [vmem:[%s4 + $0x270] sm:$0xff]
        %v1127 = vld [vmem:[%s4 + $0x278] sm:$0xff]
        %v1128 = vld [vmem:[%s4 + $0x280] sm:$0xff]
        %v1129 = vld [vmem:[%s4 + $0x288] sm:$0xff]
        %v1130 = vld [vmem:[%s4 + $0x290] sm:$0xff]
        %v1131 = vld [vmem:[%s4 + $0x298] sm:$0xff]
        %v1132 = vld [vmem:[%s4 + $0x2a0] sm:$0xff]
        %v1133 = vld [vmem:[%s4 + $0x2a8] sm:$0xff]
        %v1134 = vld [vmem:[%s4 + $0x2b0] sm:$0xff]
        %v1135 = vld [vmem:[%s4 + $0x2b8] sm:$0xff]
        %v1136 = vld [vmem:[%s4 + $0x2c0] sm:$0xff]
        %v1137 = vld [vmem:[%s4 + $0x2c8] sm:$0xff]
        %v1138 = vld [vmem:[%s4 + $0x2d0] sm:$0xff]
        %v1139 = vld [vmem:[%s4 + $0x2d8] sm:$0xff]
        %v1140 = vld [vmem:[%s4 + $0x2e0] sm:$0xff]
        %v1141 = vld [vmem:[%s4 + $0x2e8] sm:$0xff]
        %v1142 = vld [vmem:[%s4 + $0x2f0] sm:$0xff]
        %v1143 = vld [vmem:[%s4 + $0x2f8] sm:$0xff]
        %v1144 = vld [vmem:[%s4 + $0x300] sm:$0xff]
        %v1145 = vld [vmem:[%s4 + $0x308] sm:$0xff]
        %v1146 = vld [vmem:[%s4 + $0x310] sm:$0xff]
        %v1147 = vld [vmem:[%s4 + $0x318] sm:$0xff]
        %v1148 = vld [vmem:[%s4 + $0x320] sm:$0xff]
        %v1149 = vld [vmem:[%s4 + $0x328] sm:$0xff]
        %v1150 = vld [vmem:[%s4 + $0x330] sm:$0xff]
        %v1151 = vld [vmem:[%s4 + $0x338] sm:$0xff]
        %v1152 = vld [vmem:[%s4 + $0x340] sm:$0xff]
        %v1153 = vld [vmem:[%s4 + $0x348] sm:$0xff]
        %v1154 = vld [vmem:[%s4 + $0x350] sm:$0xff]
        %v1155 = vld [vmem:[%s4 + $0x358] sm:$0xff]
        %v1156 = vld [vmem:[%s4 + $0x360] sm:$0xff]
        %v1157 = vld [vmem:[%s4 + $0x368] sm:$0xff]
        %v1158 = vld [vmem:[%s4 + $0x370] sm:$0xff]
        %v1159 = vld [vmem:[%s4 + $0x378] sm:$0xff]
        %v1160 = vld [vmem:[%s4 + $0x380] sm:$0xff]
        %v1161 = vld [vmem:[%s4 + $0x388] sm:$0xff]
        %v1162 = vld [vmem:[%s4 + $0x390] sm:$0xff]
        %v1163 = vld [vmem:[%s4 + $0x398] sm:$0xff]
        %v1164 = vld [vmem:[%s4 + $0x3a0] sm:$0xff]
        %v1165 = vld [vmem:[%s4 + $0x3a8] sm:$0xff]
        %v1166 = vld [vmem:[%s4 + $0x3b0] sm:$0xff]
        %v1167 = vld [vmem:[%s4 + $0x3b8] sm:$0xff]
        %v1168 = vld [vmem:[%s4 + $0x3c0] sm:$0xff]
        %v1169 = vld [vmem:[%s4 + $0x3c8] sm:$0xff]
        %v1170 = vld [vmem:[%s4 + $0x3d0] sm:$0xff]
        %v1171 = vld [vmem:[%s4 + $0x3d8] sm:$0xff]
        %v1172 = vld [vmem:[%s4 + $0x3e0] sm:$0xff]
        %v1173 = vld [vmem:[%s4 + $0x3e8] sm:$0xff]
        %v1174 = vld [vmem:[%s4 + $0x3f0] sm:$0xff]
        %v1175 = vld [vmem:[%s4 + $0x3f8] sm:$0xff]
        %v1176 = vld [vmem:[%s5] sm:$0xf]
        %v1177 = vmul.f32 %v1176, 2.0
        %v1179 = vlaneseq
        %v1180 = vshrl.u32 %v1179, 7
        %v1181 = vsub.s32 0, %v1180
        %v1182 = vrot.slane %v1177, %v1181
        %v1183 = vlaneseq
        %v1184 = vshrl.u32 %v1183, 7
        %v1185 = vsub.s32 1, %v1184
        %v1186 = vrot.slane %v1177, %v1185
        %v1187 = vlaneseq
        %v1188 = vshrl.u32 %v1187, 7
        %v1189 = vsub.s32 2, %v1188
        %v1190 = vrot.slane %v1177, %v1189
        %v1191 = vlaneseq
        %v1192 = vshrl.u32 %v1191, 7
        %v1193 = vsub.s32 3, %v1192
        %v1194 = vrot.slane %v1177, %v1193
        %v1327 = vunpack.c.l.b16 %v1048
        %v1328 = vunpack.c.h.b16 %v1048
        %v1329 = vunpack.c.l.b16 %v1049
        %v1330 = vunpack.c.h.b16 %v1049
        %v1331 = vunpack.c.l.b16 %v1050
        %v1332 = vunpack.c.h.b16 %v1050
        %v1333 = vunpack.c.l.b16 %v1051
        %v1334 = vunpack.c.h.b16 %v1051
        %v1335 = vunpack.c.l.b16 %v1052
        %v1336 = vunpack.c.h.b16 %v1052
        %v1337 = vunpack.c.l.b16 %v1053
        %v1338 = vunpack.c.h.b16 %v1053
        %v1339 = vunpack.c.l.b16 %v1054
        %v1340 = vunpack.c.h.b16 %v1054
        %v1341 = vunpack.c.l.b16 %v1055
        %v1342 = vunpack.c.h.b16 %v1055
        %v1343 = vunpack.c.l.b16 %v1056
        %v1344 = vunpack.c.h.b16 %v1056
        %v1345 = vunpack.c.l.b16 %v1057
        %v1346 = vunpack.c.h.b16 %v1057
        %v1347 = vunpack.c.l.b16 %v1058
        %v1348 = vunpack.c.h.b16 %v1058
        %v1349 = vunpack.c.l.b16 %v1059
        %v1350 = vunpack.c.h.b16 %v1059
        %v1351 = vunpack.c.l.b16 %v1060
        %v1352 = vunpack.c.h.b16 %v1060
        %v1353 = vunpack.c.l.b16 %v1061
        %v1354 = vunpack.c.h.b16 %v1061
        %v1355 = vunpack.c.l.b16 %v1062
        %v1356 = vunpack.c.h.b16 %v1062
        %v1357 = vunpack.c.l.b16 %v1063
        %v1358 = vunpack.c.h.b16 %v1063
        %v1359 = vunpack.c.l.b16 %v1064
        %v1360 = vunpack.c.h.b16 %v1064
        %v1361 = vunpack.c.l.b16 %v1065
        %v1362 = vunpack.c.h.b16 %v1065
        %v1363 = vunpack.c.l.b16 %v1066
        %v1364 = vunpack.c.h.b16 %v1066
        %v1365 = vunpack.c.l.b16 %v1067
        %v1366 = vunpack.c.h.b16 %v1067
        %v1367 = vunpack.c.l.b16 %v1068
        %v1368 = vunpack.c.h.b16 %v1068
        %v1369 = vunpack.c.l.b16 %v1069
        %v1370 = vunpack.c.h.b16 %v1069
        %v1371 = vunpack.c.l.b16 %v1070
        %v1372 = vunpack.c.h.b16 %v1070
        %v1373 = vunpack.c.l.b16 %v1071
        %v1374 = vunpack.c.h.b16 %v1071
        %v1375 = vunpack.c.l.b16 %v1072
        %v1376 = vunpack.c.h.b16 %v1072
        %v1377 = vunpack.c.l.b16 %v1073
        %v1378 = vunpack.c.h.b16 %v1073
        %v1379 = vunpack.c.l.b16 %v1074
        %v1380 = vunpack.c.h.b16 %v1074
        %v1381 = vunpack.c.l.b16 %v1075
        %v1382 = vunpack.c.h.b16 %v1075
        %v1383 = vunpack.c.l.b16 %v1076
        %v1384 = vunpack.c.h.b16 %v1076
        %v1385 = vunpack.c.l.b16 %v1077
        %v1386 = vunpack.c.h.b16 %v1077
        %v1387 = vunpack.c.l.b16 %v1078
        %v1388 = vunpack.c.h.b16 %v1078
        %v1389 = vunpack.c.l.b16 %v1079
        %v1390 = vunpack.c.h.b16 %v1079
        %v1391 = vunpack.c.l.b16 %v1080
        %v1392 = vunpack.c.h.b16 %v1080
        %v1393 = vunpack.c.l.b16 %v1081
        %v1394 = vunpack.c.h.b16 %v1081
        %v1395 = vunpack.c.l.b16 %v1082
        %v1396 = vunpack.c.h.b16 %v1082
        %v1397 = vunpack.c.l.b16 %v1083
        %v1398 = vunpack.c.h.b16 %v1083
        %v1399 = vunpack.c.l.b16 %v1084
        %v1400 = vunpack.c.h.b16 %v1084
        %v1401 = vunpack.c.l.b16 %v1085
        %v1402 = vunpack.c.h.b16 %v1085
        %v1403 = vunpack.c.l.b16 %v1086
        %v1404 = vunpack.c.h.b16 %v1086
        %v1405 = vunpack.c.l.b16 %v1087
        %v1406 = vunpack.c.h.b16 %v1087
        %v1407 = vunpack.c.l.b16 %v1088
        %v1408 = vunpack.c.h.b16 %v1088
        %v1409 = vunpack.c.l.b16 %v1089
        %v1410 = vunpack.c.h.b16 %v1089
        %v1411 = vunpack.c.l.b16 %v1090
        %v1412 = vunpack.c.h.b16 %v1090
        %v1413 = vunpack.c.l.b16 %v1091
        %v1414 = vunpack.c.h.b16 %v1091
        %v1415 = vunpack.c.l.b16 %v1092
        %v1416 = vunpack.c.h.b16 %v1092
        %v1417 = vunpack.c.l.b16 %v1093
        %v1418 = vunpack.c.h.b16 %v1093
        %v1419 = vunpack.c.l.b16 %v1094
        %v1420 = vunpack.c.h.b16 %v1094
        %v1421 = vunpack.c.l.b16 %v1095
        %v1422 = vunpack.c.h.b16 %v1095
        %v1423 = vunpack.c.l.b16 %v1096
        %v1424 = vunpack.c.h.b16 %v1096
        %v1425 = vunpack.c.l.b16 %v1097
        %v1426 = vunpack.c.h.b16 %v1097
        %v1427 = vunpack.c.l.b16 %v1098
        %v1428 = vunpack.c.h.b16 %v1098
        %v1429 = vunpack.c.l.b16 %v1099
        %v1430 = vunpack.c.h.b16 %v1099
        %v1431 = vunpack.c.l.b16 %v1100
        %v1432 = vunpack.c.h.b16 %v1100
        %v1433 = vunpack.c.l.b16 %v1101
        %v1434 = vunpack.c.h.b16 %v1101
        %v1435 = vunpack.c.l.b16 %v1102
        %v1436 = vunpack.c.h.b16 %v1102
        %v1437 = vunpack.c.l.b16 %v1103
        %v1438 = vunpack.c.h.b16 %v1103
        %v1439 = vunpack.c.l.b16 %v1104
        %v1440 = vunpack.c.h.b16 %v1104
        %v1441 = vunpack.c.l.b16 %v1105
        %v1442 = vunpack.c.h.b16 %v1105
        %v1443 = vunpack.c.l.b16 %v1106
        %v1444 = vunpack.c.h.b16 %v1106
        %v1445 = vunpack.c.l.b16 %v1107
        %v1446 = vunpack.c.h.b16 %v1107
        %v1447 = vunpack.c.l.b16 %v1108
        %v1448 = vunpack.c.h.b16 %v1108
        %v1449 = vunpack.c.l.b16 %v1109
        %v1450 = vunpack.c.h.b16 %v1109
        %v1451 = vunpack.c.l.b16 %v1110
        %v1452 = vunpack.c.h.b16 %v1110
        %v1453 = vunpack.c.l.b16 %v1111
        %v1454 = vunpack.c.h.b16 %v1111
        %v1455 = vunpack.c.l.b16 %v1112
        %v1456 = vunpack.c.h.b16 %v1112
        %v1457 = vunpack.c.l.b16 %v1113
        %v1458 = vunpack.c.h.b16 %v1113
        %v1459 = vunpack.c.l.b16 %v1114
        %v1460 = vunpack.c.h.b16 %v1114
        %v1461 = vunpack.c.l.b16 %v1115
        %v1462 = vunpack.c.h.b16 %v1115
        %v1463 = vunpack.c.l.b16 %v1116
        %v1464 = vunpack.c.h.b16 %v1116
        %v1465 = vunpack.c.l.b16 %v1117
        %v1466 = vunpack.c.h.b16 %v1117
        %v1467 = vunpack.c.l.b16 %v1118
        %v1468 = vunpack.c.h.b16 %v1118
        %v1469 = vunpack.c.l.b16 %v1119
        %v1470 = vunpack.c.h.b16 %v1119
        %v1471 = vunpack.c.l.b16 %v1120
        %v1472 = vunpack.c.h.b16 %v1120
        %v1473 = vunpack.c.l.b16 %v1121
        %v1474 = vunpack.c.h.b16 %v1121
        %v1475 = vunpack.c.l.b16 %v1122
        %v1476 = vunpack.c.h.b16 %v1122
        %v1477 = vunpack.c.l.b16 %v1123
        %v1478 = vunpack.c.h.b16 %v1123
        %v1479 = vunpack.c.l.b16 %v1124
        %v1480 = vunpack.c.h.b16 %v1124
        %v1481 = vunpack.c.l.b16 %v1125
        %v1482 = vunpack.c.h.b16 %v1125
        %v1483 = vunpack.c.l.b16 %v1126
        %v1484 = vunpack.c.h.b16 %v1126
        %v1485 = vunpack.c.l.b16 %v1127
        %v1486 = vunpack.c.h.b16 %v1127
        %v1487 = vunpack.c.l.b16 %v1128
        %v1488 = vunpack.c.h.b16 %v1128
        %v1489 = vunpack.c.l.b16 %v1129
        %v1490 = vunpack.c.h.b16 %v1129
        %v1491 = vunpack.c.l.b16 %v1130
        %v1492 = vunpack.c.h.b16 %v1130
        %v1493 = vunpack.c.l.b16 %v1131
        %v1494 = vunpack.c.h.b16 %v1131
        %v1495 = vunpack.c.l.b16 %v1132
        %v1496 = vunpack.c.h.b16 %v1132
        %v1497 = vunpack.c.l.b16 %v1133
        %v1498 = vunpack.c.h.b16 %v1133
        %v1499 = vunpack.c.l.b16 %v1134
        %v1500 = vunpack.c.h.b16 %v1134
        %v1501 = vunpack.c.l.b16 %v1135
        %v1502 = vunpack.c.h.b16 %v1135
        %v1503 = vunpack.c.l.b16 %v1136
        %v1504 = vunpack.c.h.b16 %v1136
        %v1505 = vunpack.c.l.b16 %v1137
        %v1506 = vunpack.c.h.b16 %v1137
        %v1507 = vunpack.c.l.b16 %v1138
        %v1508 = vunpack.c.h.b16 %v1138
        %v1509 = vunpack.c.l.b16 %v1139
        %v1510 = vunpack.c.h.b16 %v1139
        %v1511 = vunpack.c.l.b16 %v1140
        %v1512 = vunpack.c.h.b16 %v1140
        %v1513 = vunpack.c.l.b16 %v1141
        %v1514 = vunpack.c.h.b16 %v1141
        %v1515 = vunpack.c.l.b16 %v1142
        %v1516 = vunpack.c.h.b16 %v1142
        %v1517 = vunpack.c.l.b16 %v1143
        %v1518 = vunpack.c.h.b16 %v1143
        %v1519 = vunpack.c.l.b16 %v1144
        %v1520 = vunpack.c.h.b16 %v1144
        %v1521 = vunpack.c.l.b16 %v1145
        %v1522 = vunpack.c.h.b16 %v1145
        %v1523 = vunpack.c.l.b16 %v1146
        %v1524 = vunpack.c.h.b16 %v1146
        %v1525 = vunpack.c.l.b16 %v1147
        %v1526 = vunpack.c.h.b16 %v1147
        %v1527 = vunpack.c.l.b16 %v1148
        %v1528 = vunpack.c.h.b16 %v1148
        %v1529 = vunpack.c.l.b16 %v1149
        %v1530 = vunpack.c.h.b16 %v1149
        %v1531 = vunpack.c.l.b16 %v1150
        %v1532 = vunpack.c.h.b16 %v1150
        %v1533 = vunpack.c.l.b16 %v1151
        %v1534 = vunpack.c.h.b16 %v1151
        %v1535 = vunpack.c.l.b16 %v1152
        %v1536 = vunpack.c.h.b16 %v1152
        %v1537 = vunpack.c.l.b16 %v1153
        %v1538 = vunpack.c.h.b16 %v1153
        %v1539 = vunpack.c.l.b16 %v1154
        %v1540 = vunpack.c.h.b16 %v1154
        %v1541 = vunpack.c.l.b16 %v1155
        %v1542 = vunpack.c.h.b16 %v1155
        %v1543 = vunpack.c.l.b16 %v1156
        %v1544 = vunpack.c.h.b16 %v1156
        %v1545 = vunpack.c.l.b16 %v1157
        %v1546 = vunpack.c.h.b16 %v1157
        %v1547 = vunpack.c.l.b16 %v1158
        %v1548 = vunpack.c.h.b16 %v1158
        %v1549 = vunpack.c.l.b16 %v1159
        %v1550 = vunpack.c.h.b16 %v1159
        %v1551 = vunpack.c.l.b16 %v1160
        %v1552 = vunpack.c.h.b16 %v1160
        %v1553 = vunpack.c.l.b16 %v1161
        %v1554 = vunpack.c.h.b16 %v1161
        %v1555 = vunpack.c.l.b16 %v1162
        %v1556 = vunpack.c.h.b16 %v1162
        %v1557 = vunpack.c.l.b16 %v1163
        %v1558 = vunpack.c.h.b16 %v1163
        %v1559 = vunpack.c.l.b16 %v1164
        %v1560 = vunpack.c.h.b16 %v1164
        %v1561 = vunpack.c.l.b16 %v1165
        %v1562 = vunpack.c.h.b16 %v1165
        %v1563 = vunpack.c.l.b16 %v1166
        %v1564 = vunpack.c.h.b16 %v1166
        %v1565 = vunpack.c.l.b16 %v1167
        %v1566 = vunpack.c.h.b16 %v1167
        %v1567 = vunpack.c.l.b16 %v1168
        %v1568 = vunpack.c.h.b16 %v1168
        %v1569 = vunpack.c.l.b16 %v1169
        %v1570 = vunpack.c.h.b16 %v1169
        %v1571 = vunpack.c.l.b16 %v1170
        %v1572 = vunpack.c.h.b16 %v1170
        %v1573 = vunpack.c.l.b16 %v1171
        %v1574 = vunpack.c.h.b16 %v1171
        %v1575 = vunpack.c.l.b16 %v1172
        %v1576 = vunpack.c.h.b16 %v1172
        %v1577 = vunpack.c.l.b16 %v1173
        %v1578 = vunpack.c.h.b16 %v1173
        %v1579 = vunpack.c.l.b16 %v1174
        %v1580 = vunpack.c.h.b16 %v1174
        %v1581 = vunpack.c.l.b16 %v1175
        %v1582 = vunpack.c.h.b16 %v1175
        %v1583 = vpack.c.b16 %v1331, %v1327
        %v1584 = vpack.c.b16 %v1332, %v1328
        %v1585 = vpack.c.b16 %v1333, %v1329
        %v1586 = vpack.c.b16 %v1334, %v1330
        %v1587 = vpack.c.b16 %v1339, %v1335
        %v1588 = vpack.c.b16 %v1340, %v1336
        %v1589 = vpack.c.b16 %v1341, %v1337
        %v1590 = vpack.c.b16 %v1342, %v1338
        %v1591 = vpack.c.b16 %v1347, %v1343
        %v1592 = vpack.c.b16 %v1348, %v1344
        %v1593 = vpack.c.b16 %v1349, %v1345
        %v1594 = vpack.c.b16 %v1350, %v1346
        %v1595 = vpack.c.b16 %v1355, %v1351
        %v1596 = vpack.c.b16 %v1356, %v1352
        %v1597 = vpack.c.b16 %v1357, %v1353
        %v1598 = vpack.c.b16 %v1358, %v1354
        %v1599 = vpack.c.b16 %v1363, %v1359
        %v1600 = vpack.c.b16 %v1364, %v1360
        %v1601 = vpack.c.b16 %v1365, %v1361
        %v1602 = vpack.c.b16 %v1366, %v1362
        %v1603 = vpack.c.b16 %v1371, %v1367
        %v1604 = vpack.c.b16 %v1372, %v1368
        %v1605 = vpack.c.b16 %v1373, %v1369
        %v1606 = vpack.c.b16 %v1374, %v1370
        %v1607 = vpack.c.b16 %v1379, %v1375
        %v1608 = vpack.c.b16 %v1380, %v1376
        %v1609 = vpack.c.b16 %v1381, %v1377
        %v1610 = vpack.c.b16 %v1382, %v1378
        %v1611 = vpack.c.b16 %v1387, %v1383
        %v1612 = vpack.c.b16 %v1388, %v1384
        %v1613 = vpack.c.b16 %v1389, %v1385
        %v1614 = vpack.c.b16 %v1390, %v1386
        %v1615 = vpack.c.b16 %v1395, %v1391
        %v1616 = vpack.c.b16 %v1396, %v1392
        %v1617 = vpack.c.b16 %v1397, %v1393
        %v1618 = vpack.c.b16 %v1398, %v1394
        %v1619 = vpack.c.b16 %v1403, %v1399
        %v1620 = vpack.c.b16 %v1404, %v1400
        %v1621 = vpack.c.b16 %v1405, %v1401
        %v1622 = vpack.c.b16 %v1406, %v1402
        %v1623 = vpack.c.b16 %v1411, %v1407
        %v1624 = vpack.c.b16 %v1412, %v1408
        %v1625 = vpack.c.b16 %v1413, %v1409
        %v1626 = vpack.c.b16 %v1414, %v1410
        %v1627 = vpack.c.b16 %v1419, %v1415
        %v1628 = vpack.c.b16 %v1420, %v1416
        %v1629 = vpack.c.b16 %v1421, %v1417
        %v1630 = vpack.c.b16 %v1422, %v1418
        %v1631 = vpack.c.b16 %v1427, %v1423
        %v1632 = vpack.c.b16 %v1428, %v1424
        %v1633 = vpack.c.b16 %v1429, %v1425
        %v1634 = vpack.c.b16 %v1430, %v1426
        %v1635 = vpack.c.b16 %v1435, %v1431
        %v1636 = vpack.c.b16 %v1436, %v1432
        %v1637 = vpack.c.b16 %v1437, %v1433
        %v1638 = vpack.c.b16 %v1438, %v1434
        %v1639 = vpack.c.b16 %v1443, %v1439
        %v1640 = vpack.c.b16 %v1444, %v1440
        %v1641 = vpack.c.b16 %v1445, %v1441
        %v1642 = vpack.c.b16 %v1446, %v1442
        %v1643 = vpack.c.b16 %v1451, %v1447
        %v1644 = vpack.c.b16 %v1452, %v1448
        %v1645 = vpack.c.b16 %v1453, %v1449
        %v1646 = vpack.c.b16 %v1454, %v1450
        %v1647 = vpack.c.b16 %v1459, %v1455
        %v1648 = vpack.c.b16 %v1460, %v1456
        %v1649 = vpack.c.b16 %v1461, %v1457
        %v1650 = vpack.c.b16 %v1462, %v1458
        %v1651 = vpack.c.b16 %v1467, %v1463
        %v1652 = vpack.c.b16 %v1468, %v1464
        %v1653 = vpack.c.b16 %v1469, %v1465
        %v1654 = vpack.c.b16 %v1470, %v1466
        %v1655 = vpack.c.b16 %v1475, %v1471
        %v1656 = vpack.c.b16 %v1476, %v1472
        %v1657 = vpack.c.b16 %v1477, %v1473
        %v1658 = vpack.c.b16 %v1478, %v1474
        %v1659 = vpack.c.b16 %v1483, %v1479
        %v1660 = vpack.c.b16 %v1484, %v1480
        %v1661 = vpack.c.b16 %v1485, %v1481
        %v1662 = vpack.c.b16 %v1486, %v1482
        %v1663 = vpack.c.b16 %v1491, %v1487
        %v1664 = vpack.c.b16 %v1492, %v1488
        %v1665 = vpack.c.b16 %v1493, %v1489
        %v1666 = vpack.c.b16 %v1494, %v1490
        %v1667 = vpack.c.b16 %v1499, %v1495
        %v1668 = vpack.c.b16 %v1500, %v1496
        %v1669 = vpack.c.b16 %v1501, %v1497
        %v1670 = vpack.c.b16 %v1502, %v1498
        %v1671 = vpack.c.b16 %v1507, %v1503
        %v1672 = vpack.c.b16 %v1508, %v1504
        %v1673 = vpack.c.b16 %v1509, %v1505
        %v1674 = vpack.c.b16 %v1510, %v1506
        %v1675 = vpack.c.b16 %v1515, %v1511
        %v1676 = vpack.c.b16 %v1516, %v1512
        %v1677 = vpack.c.b16 %v1517, %v1513
        %v1678 = vpack.c.b16 %v1518, %v1514
        %v1679 = vpack.c.b16 %v1523, %v1519
        %v1680 = vpack.c.b16 %v1524, %v1520
        %v1681 = vpack.c.b16 %v1525, %v1521
        %v1682 = vpack.c.b16 %v1526, %v1522
        %v1683 = vpack.c.b16 %v1531, %v1527
        %v1684 = vpack.c.b16 %v1532, %v1528
        %v1685 = vpack.c.b16 %v1533, %v1529
        %v1686 = vpack.c.b16 %v1534, %v1530
        %v1687 = vpack.c.b16 %v1539, %v1535
        %v1688 = vpack.c.b16 %v1540, %v1536
        %v1689 = vpack.c.b16 %v1541, %v1537
        %v1690 = vpack.c.b16 %v1542, %v1538
        %v1691 = vpack.c.b16 %v1547, %v1543
        %v1692 = vpack.c.b16 %v1548, %v1544
        %v1693 = vpack.c.b16 %v1549, %v1545
        %v1694 = vpack.c.b16 %v1550, %v1546
        %v1695 = vpack.c.b16 %v1555, %v1551
        %v1696 = vpack.c.b16 %v1556, %v1552
        %v1697 = vpack.c.b16 %v1557, %v1553
        %v1698 = vpack.c.b16 %v1558, %v1554
        %v1699 = vpack.c.b16 %v1563, %v1559
        %v1700 = vpack.c.b16 %v1564, %v1560
        %v1701 = vpack.c.b16 %v1565, %v1561
        %v1702 = vpack.c.b16 %v1566, %v1562
        %v1703 = vpack.c.b16 %v1571, %v1567
        %v1704 = vpack.c.b16 %v1572, %v1568
        %v1705 = vpack.c.b16 %v1573, %v1569
        %v1706 = vpack.c.b16 %v1574, %v1570
        %v1707 = vpack.c.b16 %v1579, %v1575
        %v1708 = vpack.c.b16 %v1580, %v1576
        %v1709 = vpack.c.b16 %v1581, %v1577
        %v1710 = vpack.c.b16 %v1582, %v1578
        %1839 = vmatprep.subr.bf16.mxu0 %v1584
        %1840 = vmatpush1.bf16.msra.mxu0 %v1583
        %1841 = vmatprep.subr.bf16.mxu0 %v1588
        %1842 = vmatpush1.bf16.msra.mxu0 %v1587
        %1843 = vmatprep.subr.bf16.mxu0 %v1592
        %1844 = vmatpush1.bf16.msra.mxu0 %v1591
        %1845 = vmatprep.subr.bf16.mxu0 %v1596
        %1846 = vmatpush1.bf16.msra.mxu0 %v1595
        %1847 = vmatprep.subr.bf16.mxu0 %v1600
        %1848 = vmatpush1.bf16.msra.mxu0 %v1599
        %1849 = vmatprep.subr.bf16.mxu0 %v1604
        %1850 = vmatpush1.bf16.msra.mxu0 %v1603
        %1851 = vmatprep.subr.bf16.mxu0 %v1608
        %1852 = vmatpush1.bf16.msra.mxu0 %v1607
        %1853 = vmatprep.subr.bf16.mxu0 %v1612
        %1854 = vmatpush1.bf16.msra.mxu0 %v1611
        %1855 = vmatprep.subr.bf16.mxu0 %v1616
        %1856 = vmatpush1.bf16.msra.mxu0 %v1615
        %1857 = vmatprep.subr.bf16.mxu0 %v1620
        %1858 = vmatpush1.bf16.msra.mxu0 %v1619
        %1859 = vmatprep.subr.bf16.mxu0 %v1624
        %1860 = vmatpush1.bf16.msra.mxu0 %v1623
        %1861 = vmatprep.subr.bf16.mxu0 %v1628
        %1862 = vmatpush1.bf16.msra.mxu0 %v1627
        %1863 = vmatprep.subr.bf16.mxu0 %v1632
        %1864 = vmatpush1.bf16.msra.mxu0 %v1631
        %1865 = vmatprep.subr.bf16.mxu0 %v1636
        %1866 = vmatpush1.bf16.msra.mxu0 %v1635
        %1867 = vmatprep.subr.bf16.mxu0 %v1640
        %1868 = vmatpush1.bf16.msra.mxu0 %v1639
        %1869 = vmatprep.subr.bf16.mxu0 %v1644
        %1870 = vmatpush1.bf16.msra.mxu0 %v1643
        %1871 = vmatprep.mubr.bf16.mxu0 %v1045
        %1872 = vmatmul.mubr.bf16.gmra.mrb[0].mxu0 %v1044
        %v1873 = vpop.f32.mrb[0].mxu0
        %v1874 = vadd.f32 %v1182, %v1873
        %v1875 = vpop.f32.mrb[0].mxu0
        %v1876 = vadd.f32 %v1186, %v1875
        %v1877 = vpop.f32.mrb[0].mxu0
        %v1878 = vadd.f32 %v1182, %v1877
        %v1879 = vpop.f32.mrb[0].mxu0
        %v1880 = vadd.f32 %v1186, %v1879
        %1881 = vdwg.mxu0
        %1882 = vmatprep.subr.bf16.mxu0 %v1648
        %1883 = vmatpush1.bf16.msra.mxu0 %v1647
        %1884 = vmatprep.subr.bf16.mxu0 %v1652
        %1885 = vmatpush1.bf16.msra.mxu0 %v1651
        %1886 = vmatprep.subr.bf16.mxu0 %v1656
        %1887 = vmatpush1.bf16.msra.mxu0 %v1655
        %1888 = vmatprep.subr.bf16.mxu0 %v1660
        %1889 = vmatpush1.bf16.msra.mxu0 %v1659
        %1890 = vmatprep.subr.bf16.mxu0 %v1664
        %1891 = vmatpush1.bf16.msra.mxu0 %v1663
        %1892 = vmatprep.subr.bf16.mxu0 %v1668
        %1893 = vmatpush1.bf16.msra.mxu0 %v1667
        %1894 = vmatprep.subr.bf16.mxu0 %v1672
        %1895 = vmatpush1.bf16.msra.mxu0 %v1671
        %1896 = vmatprep.subr.bf16.mxu0 %v1676
        %1897 = vmatpush1.bf16.msra.mxu0 %v1675
        %1898 = vmatprep.subr.bf16.mxu0 %v1680
        %1899 = vmatpush1.bf16.msra.mxu0 %v1679
        %1900 = vmatprep.subr.bf16.mxu0 %v1684
        %1901 = vmatpush1.bf16.msra.mxu0 %v1683
        %1902 = vmatprep.subr.bf16.mxu0 %v1688
        %1903 = vmatpush1.bf16.msra.mxu0 %v1687
        %1904 = vmatprep.subr.bf16.mxu0 %v1692
        %1905 = vmatpush1.bf16.msra.mxu0 %v1691
        %1906 = vmatprep.subr.bf16.mxu0 %v1696
        %1907 = vmatpush1.bf16.msra.mxu0 %v1695
        %1908 = vmatprep.subr.bf16.mxu0 %v1700
        %1909 = vmatpush1.bf16.msra.mxu0 %v1699
        %1910 = vmatprep.subr.bf16.mxu0 %v1704
        %1911 = vmatpush1.bf16.msra.mxu0 %v1703
        %1912 = vmatprep.subr.bf16.mxu0 %v1708
        %1913 = vmatpush1.bf16.msra.mxu0 %v1707
        %1914 = vmatprep.mubr.bf16.mxu0 %v1047
        %1915 = vmatmul.mubr.bf16.gmra.mrb[0].mxu0 %v1046
        %v1916 = vpop.f32.mrb[0].mxu0
        %v1917 = vadd.f32 %v1874, %v1916
        %v1918 = vpop.f32.mrb[0].mxu0
        %v1919 = vadd.f32 %v1876, %v1918
        %v1920 = vpop.f32.mrb[0].mxu0
        %v1921 = vadd.f32 %v1878, %v1920
        %v1922 = vpop.f32.mrb[0].mxu0
        %v1923 = vadd.f32 %v1880, %v1922
        %1924 = vdwg.mxu0
        %1925 = vmatprep.subr.bf16.mxu0 %v1586
        %1926 = vmatpush1.bf16.msra.mxu0 %v1585
        %1927 = vmatprep.subr.bf16.mxu0 %v1590
        %1928 = vmatpush1.bf16.msra.mxu0 %v1589
        %1929 = vmatprep.subr.bf16.mxu0 %v1594
        %1930 = vmatpush1.bf16.msra.mxu0 %v1593
        %1931 = vmatprep.subr.bf16.mxu0 %v1598
        %1932 = vmatpush1.bf16.msra.mxu0 %v1597
        %1933 = vmatprep.subr.bf16.mxu0 %v1602
        %1934 = vmatpush1.bf16.msra.mxu0 %v1601
        %1935 = vmatprep.subr.bf16.mxu0 %v1606
        %1936 = vmatpush1.bf16.msra.mxu0 %v1605
        %1937 = vmatprep.subr.bf16.mxu0 %v1610
        %1938 = vmatpush1.bf16.msra.mxu0 %v1609
        %1939 = vmatprep.subr.bf16.mxu0 %v1614
        %1940 = vmatpush1.bf16.msra.mxu0 %v1613
        %1941 = vmatprep.subr.bf16.mxu0 %v1618
        %1942 = vmatpush1.bf16.msra.mxu0 %v1617
        %1943 = vmatprep.subr.bf16.mxu0 %v1622
        %1944 = vmatpush1.bf16.msra.mxu0 %v1621
        %1945 = vmatprep.subr.bf16.mxu0 %v1626
        %1946 = vmatpush1.bf16.msra.mxu0 %v1625
        %1947 = vmatprep.subr.bf16.mxu0 %v1630
        %1948 = vmatpush1.bf16.msra.mxu0 %v1629
        %1949 = vmatprep.subr.bf16.mxu0 %v1634
        %1950 = vmatpush1.bf16.msra.mxu0 %v1633
        %1951 = vmatprep.subr.bf16.mxu0 %v1638
        %1952 = vmatpush1.bf16.msra.mxu0 %v1637
        %1953 = vmatprep.subr.bf16.mxu0 %v1642
        %1954 = vmatpush1.bf16.msra.mxu0 %v1641
        %1955 = vmatprep.subr.bf16.mxu0 %v1646
        %1956 = vmatpush1.bf16.msra.mxu0 %v1645
        %1957 = vmatprep.mubr.bf16.mxu0 %v1045
        %1958 = vmatmul.mubr.bf16.gmra.mrb[0].mxu0 %v1044
        %v1959 = vpop.f32.mrb[0].mxu0
        %v1960 = vadd.f32 %v1190, %v1959
        %v1961 = vpop.f32.mrb[0].mxu0
        %v1962 = vadd.f32 %v1194, %v1961
        %v1963 = vpop.f32.mrb[0].mxu0
        %v1964 = vadd.f32 %v1190, %v1963
        %v1965 = vpop.f32.mrb[0].mxu0
        %v1966 = vadd.f32 %v1194, %v1965
        %1967 = vdwg.mxu0
        %1968 = vmatprep.subr.bf16.mxu0 %v1650
        %1969 = vmatpush1.bf16.msra.mxu0 %v1649
        %1970 = vmatprep.subr.bf16.mxu0 %v1654
        %1971 = vmatpush1.bf16.msra.mxu0 %v1653
        %1972 = vmatprep.subr.bf16.mxu0 %v1658
        %1973 = vmatpush1.bf16.msra.mxu0 %v1657
        %1974 = vmatprep.subr.bf16.mxu0 %v1662
        %1975 = vmatpush1.bf16.msra.mxu0 %v1661
        %1976 = vmatprep.subr.bf16.mxu0 %v1666
        %1977 = vmatpush1.bf16.msra.mxu0 %v1665
        %1978 = vmatprep.subr.bf16.mxu0 %v1670
        %1979 = vmatpush1.bf16.msra.mxu0 %v1669
        %1980 = vmatprep.subr.bf16.mxu0 %v1674
        %1981 = vmatpush1.bf16.msra.mxu0 %v1673
        %1982 = vmatprep.subr.bf16.mxu0 %v1678
        %1983 = vmatpush1.bf16.msra.mxu0 %v1677
        %1984 = vmatprep.subr.bf16.mxu0 %v1682
        %1985 = vmatpush1.bf16.msra.mxu0 %v1681
        %1986 = vmatprep.subr.bf16.mxu0 %v1686
        %1987 = vmatpush1.bf16.msra.mxu0 %v1685
        %1988 = vmatprep.subr.bf16.mxu0 %v1690
        %1989 = vmatpush1.bf16.msra.mxu0 %v1689
        %1990 = vmatprep.subr.bf16.mxu0 %v1694
        %1991 = vmatpush1.bf16.msra.mxu0 %v1693
        %1992 = vmatprep.subr.bf16.mxu0 %v1698
        %1993 = vmatpush1.bf16.msra.mxu0 %v1697
        %1994 = vmatprep.subr.bf16.mxu0 %v1702
        %1995 = vmatpush1.bf16.msra.mxu0 %v1701
        %1996 = vmatprep.subr.bf16.mxu0 %v1706
        %1997 = vmatpush1.bf16.msra.mxu0 %v1705
        %1998 = vmatprep.subr.bf16.mxu0 %v1710
        %1999 = vmatpush1.bf16.msra.mxu0 %v1709
        %2000 = vmatprep.mubr.bf16.mxu0 %v1047
        %2001 = vmatmul.mubr.bf16.gmra.mrb[0].mxu0 %v1046
        %v2002 = vpop.f32.mrb[0].mxu0
        %v2003 = vadd.f32 %v1960, %v2002
        %v2004 = vpop.f32.mrb[0].mxu0
        %v2005 = vadd.f32 %v1962, %v2004
        %v2006 = vpop.f32.mrb[0].mxu0
        %v2007 = vadd.f32 %v1964, %v2006
        %v2008 = vpop.f32.mrb[0].mxu0
        %v2009 = vadd.f32 %v1966, %v2008
        %2010 = vdwg.mxu0
        %v2011 = vld [vmem:[%s6] sm:$0xf]
        %v2012 = vld [vmem:[%s6 + $0x4] sm:$0xf]
        %v2013 = vld [vmem:[%s6 + $0x8] sm:$0xf]
        %v2014 = vld [vmem:[%s6 + $0xc] sm:$0xf]
        %v2015 = vld [vmem:[%s6 + $0x10] sm:$0xf]
        %v2016 = vld [vmem:[%s6 + $0x14] sm:$0xf]
        %v2017 = vld [vmem:[%s6 + $0x18] sm:$0xf]
        %v2018 = vld [vmem:[%s6 + $0x1c] sm:$0xf]
        %v2019 = vld [vmem:[%s6 + $0x20] sm:$0xf]
        %v2020 = vld [vmem:[%s6 + $0x24] sm:$0xf]
        %v2021 = vld [vmem:[%s6 + $0x28] sm:$0xf]
        %v2022 = vld [vmem:[%s6 + $0x2c] sm:$0xf]
        %v2023 = vld [vmem:[%s6 + $0x30] sm:$0xf]
        %v2024 = vld [vmem:[%s6 + $0x34] sm:$0xf]
        %v2025 = vld [vmem:[%s6 + $0x38] sm:$0xf]
        %v2026 = vld [vmem:[%s6 + $0x3c] sm:$0xf]
        %v2027 = vld [vmem:[%s6 + $0x40] sm:$0xf]
        %v2028 = vld [vmem:[%s6 + $0x44] sm:$0xf]
        %v2029 = vld [vmem:[%s6 + $0x48] sm:$0xf]
        %v2030 = vld [vmem:[%s6 + $0x4c] sm:$0xf]
        %v2031 = vld [vmem:[%s6 + $0x50] sm:$0xf]
        %v2032 = vld [vmem:[%s6 + $0x54] sm:$0xf]
        %v2033 = vld [vmem:[%s6 + $0x58] sm:$0xf]
        %v2034 = vld [vmem:[%s6 + $0x5c] sm:$0xf]
        %v2035 = vld [vmem:[%s6 + $0x60] sm:$0xf]
        %v2036 = vld [vmem:[%s6 + $0x64] sm:$0xf]
        %v2037 = vld [vmem:[%s6 + $0x68] sm:$0xf]
        %v2038 = vld [vmem:[%s6 + $0x6c] sm:$0xf]
        %v2039 = vld [vmem:[%s6 + $0x70] sm:$0xf]
        %v2040 = vld [vmem:[%s6 + $0x74] sm:$0xf]
        %v2041 = vld [vmem:[%s6 + $0x78] sm:$0xf]
        %v2042 = vld [vmem:[%s6 + $0x7c] sm:$0xf]
        %v2043 = vld [vmem:[%s6 + $0x80] sm:$0xf]
        %v2044 = vld [vmem:[%s6 + $0x84] sm:$0xf]
        %v2045 = vld [vmem:[%s6 + $0x88] sm:$0xf]
        %v2046 = vld [vmem:[%s6 + $0x8c] sm:$0xf]
        %v2047 = vld [vmem:[%s6 + $0x90] sm:$0xf]
        %v2048 = vld [vmem:[%s6 + $0x94] sm:$0xf]
        %v2049 = vld [vmem:[%s6 + $0x98] sm:$0xf]
        %v2050 = vld [vmem:[%s6 + $0x9c] sm:$0xf]
        %v2051 = vld [vmem:[%s6 + $0xa0] sm:$0xf]
        %v2052 = vld [vmem:[%s6 + $0xa4] sm:$0xf]
        %v2053 = vld [vmem:[%s6 + $0xa8] sm:$0xf]
        %v2054 = vld [vmem:[%s6 + $0xac] sm:$0xf]
        %v2055 = vld [vmem:[%s6 + $0xb0] sm:$0xf]
        %v2056 = vld [vmem:[%s6 + $0xb4] sm:$0xf]
        %v2057 = vld [vmem:[%s6 + $0xb8] sm:$0xf]
        %v2058 = vld [vmem:[%s6 + $0xbc] sm:$0xf]
        %v2059 = vld [vmem:[%s6 + $0xc0] sm:$0xf]
        %v2060 = vld [vmem:[%s6 + $0xc4] sm:$0xf]
        %v2061 = vld [vmem:[%s6 + $0xc8] sm:$0xf]
        %v2062 = vld [vmem:[%s6 + $0xcc] sm:$0xf]
        %v2063 = vld [vmem:[%s6 + $0xd0] sm:$0xf]
        %v2064 = vld [vmem:[%s6 + $0xd4] sm:$0xf]
        %v2065 = vld [vmem:[%s6 + $0xd8] sm:$0xf]
        %v2066 = vld [vmem:[%s6 + $0xdc] sm:$0xf]
        %v2067 = vld [vmem:[%s6 + $0xe0] sm:$0xf]
        %v2068 = vld [vmem:[%s6 + $0xe4] sm:$0xf]
        %v2069 = vld [vmem:[%s6 + $0xe8] sm:$0xf]
        %v2070 = vld [vmem:[%s6 + $0xec] sm:$0xf]
        %v2071 = vld [vmem:[%s6 + $0xf0] sm:$0xf]
        %v2072 = vld [vmem:[%s6 + $0xf4] sm:$0xf]
        %v2073 = vld [vmem:[%s6 + $0xf8] sm:$0xf]
        %v2074 = vld [vmem:[%s6 + $0xfc] sm:$0xf]
        %v2075 = vpack.c.bf16 %v1921, %v1917
        %v2076 = vpack.c.bf16 %v1923, %v1919
        %v2077 = vpack.c.bf16 %v2007, %v2003
        %v2078 = vpack.c.bf16 %v2009, %v2005
        %v2079 = vld [vmem:[%s7] sm:$0xf]
        %v2080 = vld [vmem:[%s7 + $0x4] sm:$0xf]
        %v2081 = vld [vmem:[%s7 + $0x8] sm:$0xf]
        %v2082 = vld [vmem:[%s7 + $0xc] sm:$0xf]
        %v2083 = vld [vmem:[%s7 + $0x10] sm:$0xf]
        %v2084 = vld [vmem:[%s7 + $0x14] sm:$0xf]
        %v2085 = vld [vmem:[%s7 + $0x18] sm:$0xf]
        %v2086 = vld [vmem:[%s7 + $0x1c] sm:$0xf]
        %v2087 = vld [vmem:[%s7 + $0x20] sm:$0xf]
        %v2088 = vld [vmem:[%s7 + $0x24] sm:$0xf]
        %v2089 = vld [vmem:[%s7 + $0x28] sm:$0xf]
        %v2090 = vld [vmem:[%s7 + $0x2c] sm:$0xf]
        %v2091 = vld [vmem:[%s7 + $0x30] sm:$0xf]
        %v2092 = vld [vmem:[%s7 + $0x34] sm:$0xf]
        %v2093 = vld [vmem:[%s7 + $0x38] sm:$0xf]
        %v2094 = vld [vmem:[%s7 + $0x3c] sm:$0xf]
        %v2095 = vld [vmem:[%s7 + $0x40] sm:$0xf]
        %v2096 = vld [vmem:[%s7 + $0x44] sm:$0xf]
        %v2097 = vld [vmem:[%s7 + $0x48] sm:$0xf]
        %v2098 = vld [vmem:[%s7 + $0x4c] sm:$0xf]
        %v2099 = vld [vmem:[%s7 + $0x50] sm:$0xf]
        %v2100 = vld [vmem:[%s7 + $0x54] sm:$0xf]
        %v2101 = vld [vmem:[%s7 + $0x58] sm:$0xf]
        %v2102 = vld [vmem:[%s7 + $0x5c] sm:$0xf]
        %v2103 = vld [vmem:[%s7 + $0x60] sm:$0xf]
        %v2104 = vld [vmem:[%s7 + $0x64] sm:$0xf]
        %v2105 = vld [vmem:[%s7 + $0x68] sm:$0xf]
        %v2106 = vld [vmem:[%s7 + $0x6c] sm:$0xf]
        %v2107 = vld [vmem:[%s7 + $0x70] sm:$0xf]
        %v2108 = vld [vmem:[%s7 + $0x74] sm:$0xf]
        %v2109 = vld [vmem:[%s7 + $0x78] sm:$0xf]
        %v2110 = vld [vmem:[%s7 + $0x7c] sm:$0xf]
        %v2111 = vld [vmem:[%s7 + $0x80] sm:$0xf]
        %v2112 = vld [vmem:[%s7 + $0x84] sm:$0xf]
        %v2113 = vld [vmem:[%s7 + $0x88] sm:$0xf]
        %v2114 = vld [vmem:[%s7 + $0x8c] sm:$0xf]
        %v2115 = vld [vmem:[%s7 + $0x90] sm:$0xf]
        %v2116 = vld [vmem:[%s7 + $0x94] sm:$0xf]
        %v2117 = vld [vmem:[%s7 + $0x98] sm:$0xf]
        %v2118 = vld [vmem:[%s7 + $0x9c] sm:$0xf]
        %v2119 = vld [vmem:[%s7 + $0xa0] sm:$0xf]
        %v2120 = vld [vmem:[%s7 + $0xa4] sm:$0xf]
        %v2121 = vld [vmem:[%s7 + $0xa8] sm:$0xf]
        %v2122 = vld [vmem:[%s7 + $0xac] sm:$0xf]
        %v2123 = vld [vmem:[%s7 + $0xb0] sm:$0xf]
        %v2124 = vld [vmem:[%s7 + $0xb4] sm:$0xf]
        %v2125 = vld [vmem:[%s7 + $0xb8] sm:$0xf]
        %v2126 = vld [vmem:[%s7 + $0xbc] sm:$0xf]
        %v2127 = vld [vmem:[%s7 + $0xc0] sm:$0xf]
        %v2128 = vld [vmem:[%s7 + $0xc4] sm:$0xf]
        %v2129 = vld [vmem:[%s7 + $0xc8] sm:$0xf]
        %v2130 = vld [vmem:[%s7 + $0xcc] sm:$0xf]
        %v2131 = vld [vmem:[%s7 + $0xd0] sm:$0xf]
        %v2132 = vld [vmem:[%s7 + $0xd4] sm:$0xf]
        %v2133 = vld [vmem:[%s7 + $0xd8] sm:$0xf]
        %v2134 = vld [vmem:[%s7 + $0xdc] sm:$0xf]
        %v2135 = vld [vmem:[%s7 + $0xe0] sm:$0xf]
        %v2136 = vld [vmem:[%s7 + $0xe4] sm:$0xf]
        %v2137 = vld [vmem:[%s7 + $0xe8] sm:$0xf]
        %v2138 = vld [vmem:[%s7 + $0xec] sm:$0xf]
        %v2139 = vld [vmem:[%s7 + $0xf0] sm:$0xf]
        %v2140 = vld [vmem:[%s7 + $0xf4] sm:$0xf]
        %v2141 = vld [vmem:[%s7 + $0xf8] sm:$0xf]
        %v2142 = vld [vmem:[%s7 + $0xfc] sm:$0xf]
        %v2207 = vunpack.c.l.b16 %v2079
        %v2208 = vunpack.c.l.b16 %v2080
        %v2209 = vunpack.c.l.b16 %v2081
        %v2210 = vunpack.c.l.b16 %v2082
        %v2211 = vunpack.c.l.b16 %v2083
        %v2212 = vunpack.c.l.b16 %v2084
        %v2213 = vunpack.c.l.b16 %v2085
        %v2214 = vunpack.c.l.b16 %v2086
        %v2215 = vunpack.c.l.b16 %v2087
        %v2216 = vunpack.c.l.b16 %v2088
        %v2217 = vunpack.c.l.b16 %v2089
        %v2218 = vunpack.c.l.b16 %v2090
        %v2219 = vunpack.c.l.b16 %v2091
        %v2220 = vunpack.c.l.b16 %v2092
        %v2221 = vunpack.c.l.b16 %v2093
        %v2222 = vunpack.c.l.b16 %v2094
        %v2223 = vunpack.c.l.b16 %v2095
        %v2224 = vunpack.c.l.b16 %v2096
        %v2225 = vunpack.c.l.b16 %v2097
        %v2226 = vunpack.c.l.b16 %v2098
        %v2227 = vunpack.c.l.b16 %v2099
        %v2228 = vunpack.c.l.b16 %v2100
        %v2229 = vunpack.c.l.b16 %v2101
        %v2230 = vunpack.c.l.b16 %v2102
        %v2231 = vunpack.c.l.b16 %v2103
        %v2232 = vunpack.c.l.b16 %v2104
        %v2233 = vunpack.c.l.b16 %v2105
        %v2234 = vunpack.c.l.b16 %v2106
        %v2235 = vunpack.c.l.b16 %v2107
        %v2236 = vunpack.c.l.b16 %v2108
        %v2237 = vunpack.c.l.b16 %v2109
        %v2238 = vunpack.c.l.b16 %v2110
        %v2239 = vunpack.c.l.b16 %v2111
        %v2240 = vunpack.c.l.b16 %v2112
        %v2241 = vunpack.c.l.b16 %v2113
        %v2242 = vunpack.c.l.b16 %v2114
        %v2243 = vunpack.c.l.b16 %v2115
        %v2244 = vunpack.c.l.b16 %v2116
        %v2245 = vunpack.c.l.b16 %v2117
        %v2246 = vunpack.c.l.b16 %v2118
        %v2247 = vunpack.c.l.b16 %v2119
        %v2248 = vunpack.c.l.b16 %v2120
        %v2249 = vunpack.c.l.b16 %v2121
        %v2250 = vunpack.c.l.b16 %v2122
        %v2251 = vunpack.c.l.b16 %v2123
        %v2252 = vunpack.c.l.b16 %v2124
        %v2253 = vunpack.c.l.b16 %v2125
        %v2254 = vunpack.c.l.b16 %v2126
        %v2255 = vunpack.c.l.b16 %v2127
        %v2256 = vunpack.c.l.b16 %v2128
        %v2257 = vunpack.c.l.b16 %v2129
        %v2258 = vunpack.c.l.b16 %v2130
        %v2259 = vunpack.c.l.b16 %v2131
        %v2260 = vunpack.c.l.b16 %v2132
        %v2261 = vunpack.c.l.b16 %v2133
        %v2262 = vunpack.c.l.b16 %v2134
        %v2263 = vunpack.c.l.b16 %v2135
        %v2264 = vunpack.c.l.b16 %v2136
        %v2265 = vunpack.c.l.b16 %v2137
        %v2266 = vunpack.c.l.b16 %v2138
        %v2267 = vunpack.c.l.b16 %v2139
        %v2268 = vunpack.c.l.b16 %v2140
        %v2269 = vunpack.c.l.b16 %v2141
        %v2270 = vunpack.c.l.b16 %v2142
        %v2271 = vpack.c.b16 %v2208, %v2207
        %v2272 = vpack.c.b16 %v2210, %v2209
        %v2273 = vpack.c.b16 %v2212, %v2211
        %v2274 = vpack.c.b16 %v2214, %v2213
        %v2275 = vpack.c.b16 %v2216, %v2215
        %v2276 = vpack.c.b16 %v2218, %v2217
        %v2277 = vpack.c.b16 %v2220, %v2219
        %v2278 = vpack.c.b16 %v2222, %v2221
        %v2279 = vpack.c.b16 %v2224, %v2223
        %v2280 = vpack.c.b16 %v2226, %v2225
        %v2281 = vpack.c.b16 %v2228, %v2227
        %v2282 = vpack.c.b16 %v2230, %v2229
        %v2283 = vpack.c.b16 %v2232, %v2231
        %v2284 = vpack.c.b16 %v2234, %v2233
        %v2285 = vpack.c.b16 %v2236, %v2235
        %v2286 = vpack.c.b16 %v2238, %v2237
        %v2287 = vpack.c.b16 %v2240, %v2239
        %v2288 = vpack.c.b16 %v2242, %v2241
        %v2289 = vpack.c.b16 %v2244, %v2243
        %v2290 = vpack.c.b16 %v2246, %v2245
        %v2291 = vpack.c.b16 %v2248, %v2247
        %v2292 = vpack.c.b16 %v2250, %v2249
        %v2293 = vpack.c.b16 %v2252, %v2251
        %v2294 = vpack.c.b16 %v2254, %v2253
        %v2295 = vpack.c.b16 %v2256, %v2255
        %v2296 = vpack.c.b16 %v2258, %v2257
        %v2297 = vpack.c.b16 %v2260, %v2259
        %v2298 = vpack.c.b16 %v2262, %v2261
        %v2299 = vpack.c.b16 %v2264, %v2263
        %v2300 = vpack.c.b16 %v2266, %v2265
        %v2301 = vpack.c.b16 %v2268, %v2267
        %v2302 = vpack.c.b16 %v2270, %v2269
        %2335 = vmatprep.subr.bf16.mxu0 0
        %2336 = vmatpush1.bf16.msra.mxu0 %v2271
        %2337 = vmatprep.subr.bf16.mxu0 0
        %2338 = vmatpush1.bf16.msra.mxu0 %v2272
        %2339 = vmatprep.subr.bf16.mxu0 0
        %2340 = vmatpush1.bf16.msra.mxu0 %v2273
        %2341 = vmatprep.subr.bf16.mxu0 0
        %2342 = vmatpush1.bf16.msra.mxu0 %v2274
        %2343 = vmatprep.subr.bf16.mxu0 0
        %2344 = vmatpush1.bf16.msra.mxu0 %v2275
        %2345 = vmatprep.subr.bf16.mxu0 0
        %2346 = vmatpush1.bf16.msra.mxu0 %v2276
        %2347 = vmatprep.subr.bf16.mxu0 0
        %2348 = vmatpush1.bf16.msra.mxu0 %v2277
        %2349 = vmatprep.subr.bf16.mxu0 0
        %2350 = vmatpush1.bf16.msra.mxu0 %v2278
        %2351 = vmatprep.subr.bf16.mxu0 0
        %2352 = vmatpush1.bf16.msra.mxu0 %v2279
        %2353 = vmatprep.subr.bf16.mxu0 0
        %2354 = vmatpush1.bf16.msra.mxu0 %v2280
        %2355 = vmatprep.subr.bf16.mxu0 0
        %2356 = vmatpush1.bf16.msra.mxu0 %v2281
        %2357 = vmatprep.subr.bf16.mxu0 0
        %2358 = vmatpush1.bf16.msra.mxu0 %v2282
        %2359 = vmatprep.subr.bf16.mxu0 0
        %2360 = vmatpush1.bf16.msra.mxu0 %v2283
        %2361 = vmatprep.subr.bf16.mxu0 0
        %2362 = vmatpush1.bf16.msra.mxu0 %v2284
        %2363 = vmatprep.subr.bf16.mxu0 0
        %2364 = vmatpush1.bf16.msra.mxu0 %v2285
        %2365 = vmatprep.subr.bf16.mxu0 0
        %2366 = vmatpush1.bf16.msra.mxu0 %v2286
        %2367 = vmatprep.mubr.bf16.mxu0 %v2076
        %2368 = vmatmul.mubr.bf16.gmra.mrb[0].mxu0 %v2075
        %v2369 = vpop.f32.mrb[0].mxu0
        %v2370 = vadd.f32 0.0, %v2369
        %v2371 = vpop.f32.mrb[0].mxu0
        %v2372 = vpop.f32.mrb[0].mxu0
        %v2373 = vadd.f32 0.0, %v2372
        %v2374 = vpop.f32.mrb[0].mxu0
        %2375 = vdwg.mxu0
        %2376 = vmatprep.subr.bf16.mxu0 0
        %2377 = vmatpush1.bf16.msra.mxu0 %v2287
        %2378 = vmatprep.subr.bf16.mxu0 0
        %2379 = vmatpush1.bf16.msra.mxu0 %v2288
        %2380 = vmatprep.subr.bf16.mxu0 0
        %2381 = vmatpush1.bf16.msra.mxu0 %v2289
        %2382 = vmatprep.subr.bf16.mxu0 0
        %2383 = vmatpush1.bf16.msra.mxu0 %v2290
        %2384 = vmatprep.subr.bf16.mxu0 0
        %2385 = vmatpush1.bf16.msra.mxu0 %v2291
        %2386 = vmatprep.subr.bf16.mxu0 0
        %2387 = vmatpush1.bf16.msra.mxu0 %v2292
        %2388 = vmatprep.subr.bf16.mxu0 0
        %2389 = vmatpush1.bf16.msra.mxu0 %v2293
        %2390 = vmatprep.subr.bf16.mxu0 0
        %2391 = vmatpush1.bf16.msra.mxu0 %v2294
        %2392 = vmatprep.subr.bf16.mxu0 0
        %2393 = vmatpush1.bf16.msra.mxu0 %v2295
        %2394 = vmatprep.subr.bf16.mxu0 0
        %2395 = vmatpush1.bf16.msra.mxu0 %v2296
        %2396 = vmatprep.subr.bf16.mxu0 0
        %2397 = vmatpush1.bf16.msra.mxu0 %v2297
        %2398 = vmatprep.subr.bf16.mxu0 0
        %2399 = vmatpush1.bf16.msra.mxu0 %v2298
        %2400 = vmatprep.subr.bf16.mxu0 0
        %2401 = vmatpush1.bf16.msra.mxu0 %v2299
        %2402 = vmatprep.subr.bf16.mxu0 0
        %2403 = vmatpush1.bf16.msra.mxu0 %v2300
        %2404 = vmatprep.subr.bf16.mxu0 0
        %2405 = vmatpush1.bf16.msra.mxu0 %v2301
        %2406 = vmatprep.subr.bf16.mxu0 0
        %2407 = vmatpush1.bf16.msra.mxu0 %v2302
        %2408 = vmatprep.mubr.bf16.mxu0 %v2078
        %2409 = vmatmul.mubr.bf16.gmra.mrb[0].mxu0 %v2077
        %v2410 = vpop.f32.mrb[0].mxu0
        %v2411 = vadd.f32 %v2370, %v2410
        %v2412 = vpop.f32.mrb[0].mxu0
        %v2413 = vpop.f32.mrb[0].mxu0
        %v2414 = vadd.f32 %v2373, %v2413
        %v2415 = vpop.f32.mrb[0].mxu0
        %2416 = vdwg.mxu0
        %v2481 = vunpack.c.l.b16 %v2011
        %v2482 = vunpack.c.l.b16 %v2012
        %v2483 = vunpack.c.l.b16 %v2013
        %v2484 = vunpack.c.l.b16 %v2014
        %v2485 = vunpack.c.l.b16 %v2015
        %v2486 = vunpack.c.l.b16 %v2016
        %v2487 = vunpack.c.l.b16 %v2017
        %v2488 = vunpack.c.l.b16 %v2018
        %v2489 = vunpack.c.l.b16 %v2019
        %v2490 = vunpack.c.l.b16 %v2020
        %v2491 = vunpack.c.l.b16 %v2021
        %v2492 = vunpack.c.l.b16 %v2022
        %v2493 = vunpack.c.l.b16 %v2023
        %v2494 = vunpack.c.l.b16 %v2024
        %v2495 = vunpack.c.l.b16 %v2025
        %v2496 = vunpack.c.l.b16 %v2026
        %v2497 = vunpack.c.l.b16 %v2027
        %v2498 = vunpack.c.l.b16 %v2028
        %v2499 = vunpack.c.l.b16 %v2029
        %v2500 = vunpack.c.l.b16 %v2030
        %v2501 = vunpack.c.l.b16 %v2031
        %v2502 = vunpack.c.l.b16 %v2032
        %v2503 = vunpack.c.l.b16 %v2033
        %v2504 = vunpack.c.l.b16 %v2034
        %v2505 = vunpack.c.l.b16 %v2035
        %v2506 = vunpack.c.l.b16 %v2036
        %v2507 = vunpack.c.l.b16 %v2037
        %v2508 = vunpack.c.l.b16 %v2038
        %v2509 = vunpack.c.l.b16 %v2039
        %v2510 = vunpack.c.l.b16 %v2040
        %v2511 = vunpack.c.l.b16 %v2041
        %v2512 = vunpack.c.l.b16 %v2042
        %v2513 = vunpack.c.l.b16 %v2043
        %v2514 = vunpack.c.l.b16 %v2044
        %v2515 = vunpack.c.l.b16 %v2045
        %v2516 = vunpack.c.l.b16 %v2046
        %v2517 = vunpack.c.l.b16 %v2047
        %v2518 = vunpack.c.l.b16 %v2048
        %v2519 = vunpack.c.l.b16 %v2049
        %v2520 = vunpack.c.l.b16 %v2050
        %v2521 = vunpack.c.l.b16 %v2051
        %v2522 = vunpack.c.l.b16 %v2052
        %v2523 = vunpack.c.l.b16 %v2053
        %v2524 = vunpack.c.l.b16 %v2054
        %v2525 = vunpack.c.l.b16 %v2055
        %v2526 = vunpack.c.l.b16 %v2056
        %v2527 = vunpack.c.l.b16 %v2057
        %v2528 = vunpack.c.l.b16 %v2058
        %v2529 = vunpack.c.l.b16 %v2059
        %v2530 = vunpack.c.l.b16 %v2060
        %v2531 = vunpack.c.l.b16 %v2061
        %v2532 = vunpack.c.l.b16 %v2062
        %v2533 = vunpack.c.l.b16 %v2063
        %v2534 = vunpack.c.l.b16 %v2064
        %v2535 = vunpack.c.l.b16 %v2065
        %v2536 = vunpack.c.l.b16 %v2066
        %v2537 = vunpack.c.l.b16 %v2067
        %v2538 = vunpack.c.l.b16 %v2068
        %v2539 = vunpack.c.l.b16 %v2069
        %v2540 = vunpack.c.l.b16 %v2070
        %v2541 = vunpack.c.l.b16 %v2071
        %v2542 = vunpack.c.l.b16 %v2072
        %v2543 = vunpack.c.l.b16 %v2073
        %v2544 = vunpack.c.l.b16 %v2074
        %v2545 = vpack.c.b16 %v2482, %v2481
        %v2546 = vpack.c.b16 %v2484, %v2483
        %v2547 = vpack.c.b16 %v2486, %v2485
        %v2548 = vpack.c.b16 %v2488, %v2487
        %v2549 = vpack.c.b16 %v2490, %v2489
        %v2550 = vpack.c.b16 %v2492, %v2491
        %v2551 = vpack.c.b16 %v2494, %v2493
        %v2552 = vpack.c.b16 %v2496, %v2495
        %v2553 = vpack.c.b16 %v2498, %v2497
        %v2554 = vpack.c.b16 %v2500, %v2499
        %v2555 = vpack.c.b16 %v2502, %v2501
        %v2556 = vpack.c.b16 %v2504, %v2503
        %v2557 = vpack.c.b16 %v2506, %v2505
        %v2558 = vpack.c.b16 %v2508, %v2507
        %v2559 = vpack.c.b16 %v2510, %v2509
        %v2560 = vpack.c.b16 %v2512, %v2511
        %v2561 = vpack.c.b16 %v2514, %v2513
        %v2562 = vpack.c.b16 %v2516, %v2515
        %v2563 = vpack.c.b16 %v2518, %v2517
        %v2564 = vpack.c.b16 %v2520, %v2519
        %v2565 = vpack.c.b16 %v2522, %v2521
        %v2566 = vpack.c.b16 %v2524, %v2523
        %v2567 = vpack.c.b16 %v2526, %v2525
        %v2568 = vpack.c.b16 %v2528, %v2527
        %v2569 = vpack.c.b16 %v2530, %v2529
        %v2570 = vpack.c.b16 %v2532, %v2531
        %v2571 = vpack.c.b16 %v2534, %v2533
        %v2572 = vpack.c.b16 %v2536, %v2535
        %v2573 = vpack.c.b16 %v2538, %v2537
        %v2574 = vpack.c.b16 %v2540, %v2539
        %v2575 = vpack.c.b16 %v2542, %v2541
        %v2576 = vpack.c.b16 %v2544, %v2543
        %2609 = vmatprep.subr.bf16.mxu0 0
        %2610 = vmatpush1.bf16.msra.mxu0 %v2545
        %2611 = vmatprep.subr.bf16.mxu0 0
        %2612 = vmatpush1.bf16.msra.mxu0 %v2546
        %2613 = vmatprep.subr.bf16.mxu0 0
        %2614 = vmatpush1.bf16.msra.mxu0 %v2547
        %2615 = vmatprep.subr.bf16.mxu0 0
        %2616 = vmatpush1.bf16.msra.mxu0 %v2548
        %2617 = vmatprep.subr.bf16.mxu0 0
        %2618 = vmatpush1.bf16.msra.mxu0 %v2549
        %2619 = vmatprep.subr.bf16.mxu0 0
        %2620 = vmatpush1.bf16.msra.mxu0 %v2550
        %2621 = vmatprep.subr.bf16.mxu0 0
        %2622 = vmatpush1.bf16.msra.mxu0 %v2551
        %2623 = vmatprep.subr.bf16.mxu0 0
        %2624 = vmatpush1.bf16.msra.mxu0 %v2552
        %2625 = vmatprep.subr.bf16.mxu0 0
        %2626 = vmatpush1.bf16.msra.mxu0 %v2553
        %2627 = vmatprep.subr.bf16.mxu0 0
        %2628 = vmatpush1.bf16.msra.mxu0 %v2554
        %2629 = vmatprep.subr.bf16.mxu0 0
        %2630 = vmatpush1.bf16.msra.mxu0 %v2555
        %2631 = vmatprep.subr.bf16.mxu0 0
        %2632 = vmatpush1.bf16.msra.mxu0 %v2556
        %2633 = vmatprep.subr.bf16.mxu0 0
        %2634 = vmatpush1.bf16.msra.mxu0 %v2557
        %2635 = vmatprep.subr.bf16.mxu0 0
        %2636 = vmatpush1.bf16.msra.mxu0 %v2558
        %2637 = vmatprep.subr.bf16.mxu0 0
        %2638 = vmatpush1.bf16.msra.mxu0 %v2559
        %2639 = vmatprep.subr.bf16.mxu0 0
        %2640 = vmatpush1.bf16.msra.mxu0 %v2560
        %2641 = vmatprep.mubr.bf16.mxu0 %v806
        %2642 = vmatmul.mubr.bf16.gmra.mrb[0].mxu0 %v805
        %v2643 = vpop.f32.mrb[0].mxu0
        %v2644 = vadd.f32 %v2411, %v2643
        %v2645 = vpop.f32.mrb[0].mxu0
        %v2646 = vpop.f32.mrb[0].mxu0
        %v2647 = vadd.f32 %v2414, %v2646
        %v2648 = vpop.f32.mrb[0].mxu0
        %2649 = vdwg.mxu0
        %2650 = vmatprep.subr.bf16.mxu0 0
        %2651 = vmatpush1.bf16.msra.mxu0 %v2561
        %2652 = vmatprep.subr.bf16.mxu0 0
        %2653 = vmatpush1.bf16.msra.mxu0 %v2562
        %2654 = vmatprep.subr.bf16.mxu0 0
        %2655 = vmatpush1.bf16.msra.mxu0 %v2563
        %2656 = vmatprep.subr.bf16.mxu0 0
        %2657 = vmatpush1.bf16.msra.mxu0 %v2564
        %2658 = vmatprep.subr.bf16.mxu0 0
        %2659 = vmatpush1.bf16.msra.mxu0 %v2565
        %2660 = vmatprep.subr.bf16.mxu0 0
        %2661 = vmatpush1.bf16.msra.mxu0 %v2566
        %2662 = vmatprep.subr.bf16.mxu0 0
        %2663 = vmatpush1.bf16.msra.mxu0 %v2567
        %2664 = vmatprep.subr.bf16.mxu0 0
        %2665 = vmatpush1.bf16.msra.mxu0 %v2568
        %2666 = vmatprep.subr.bf16.mxu0 0
        %2667 = vmatpush1.bf16.msra.mxu0 %v2569
        %2668 = vmatprep.subr.bf16.mxu0 0
        %2669 = vmatpush1.bf16.msra.mxu0 %v2570
        %2670 = vmatprep.subr.bf16.mxu0 0
        %2671 = vmatpush1.bf16.msra.mxu0 %v2571
        %2672 = vmatprep.subr.bf16.mxu0 0
        %2673 = vmatpush1.bf16.msra.mxu0 %v2572
        %2674 = vmatprep.subr.bf16.mxu0 0
        %2675 = vmatpush1.bf16.msra.mxu0 %v2573
        %2676 = vmatprep.subr.bf16.mxu0 0
        %2677 = vmatpush1.bf16.msra.mxu0 %v2574
        %2678 = vmatprep.subr.bf16.mxu0 0
        %2679 = vmatpush1.bf16.msra.mxu0 %v2575
        %2680 = vmatprep.subr.bf16.mxu0 0
        %2681 = vmatpush1.bf16.msra.mxu0 %v2576
        %2682 = vmatprep.mubr.bf16.mxu0 %v808
        %2683 = vmatmul.mubr.bf16.gmra.mrb[0].mxu0 %v807
        %v2684 = vpop.f32.mrb[0].mxu0
        %v2685 = vadd.f32 %v2644, %v2684
        %v2686 = vpop.f32.mrb[0].mxu0
        %v2687 = vpop.f32.mrb[0].mxu0
        %v2688 = vadd.f32 %v2647, %v2687
        %v2689 = vpop.f32.mrb[0].mxu0
        %2690 = vdwg.mxu0
        %v2691 = vld [vmem:[%s8] sm:$0x1]
        %v2693 = vlaneseq
        %v2694 = vshrl.u32 %v2693, 7
        %v2695 = vsub.s32 0, %v2694
        %v2696 = vrot.slane %v2691, %v2695
        %v2698 = vadd.f32 %v2685, %v2696
        %v2699 = vadd.f32 %v2688, %v2696
        %v2700 = vmax.f32 %v2698, 0.0
        %v2701 = vmax.f32 %v2699, 0.0
        %v2702 = vld [vmem:[%s9] sm:$0x1]
        %v2703 = vpack.c.bf16 %v2701, %v2700
        %s2704 = sld [smem:[#allocation2]]
        %v2705 = vstv %s2704
        %2706 = vmatprep.subr.bf16.mxu0 0
        %2707 = vmatpush1.bf16.xpose.msra.mxu0 %v2703
        %2708 = vmatprep.subr.bf16.mxu0 0
        %2709 = vmatpush1.bf16.xpose.msra.mxu0 0
        %2710 = vmatprep.subr.bf16.mxu0 0
        %2711 = vmatpush1.bf16.xpose.msra.mxu0 0
        %2712 = vmatprep.subr.bf16.mxu0 0
        %2713 = vmatpush1.bf16.xpose.msra.mxu0 0
        %2714 = vmatprep.subr.bf16.mxu0 0
        %2715 = vmatpush1.bf16.xpose.msra.mxu0 0
        %2716 = vmatprep.subr.bf16.mxu0 0
        %2717 = vmatpush1.bf16.xpose.msra.mxu0 0
        %2718 = vmatprep.subr.bf16.mxu0 0
        %2719 = vmatpush1.bf16.xpose.msra.mxu0 0
        %2720 = vmatprep.subr.bf16.mxu0 0
        %2721 = vmatpush1.bf16.xpose.msra.mxu0 0
        %2722 = vmatprep.subr.bf16.mxu0 0
        %2723 = vmatpush1.bf16.xpose.msra.mxu0 0
        %2724 = vmatprep.subr.bf16.mxu0 0
        %2725 = vmatpush1.bf16.xpose.msra.mxu0 0
        %2726 = vmatprep.subr.bf16.mxu0 0
        %2727 = vmatpush1.bf16.xpose.msra.mxu0 0
        %2728 = vmatprep.subr.bf16.mxu0 0
        %2729 = vmatpush1.bf16.xpose.msra.mxu0 0
        %2730 = vmatprep.subr.bf16.mxu0 0
        %2731 = vmatpush1.bf16.xpose.msra.mxu0 0
        %2732 = vmatprep.subr.bf16.mxu0 0
        %2733 = vmatpush1.bf16.xpose.msra.mxu0 0
        %2734 = vmatprep.subr.bf16.mxu0 0
        %2735 = vmatpush1.bf16.xpose.msra.mxu0 0
        %2736 = vmatprep.subr.bf16.mxu0 0
        %2737 = vmatpush1.bf16.xpose.msra.mxu0 0
        %2738 = vmatprep.mubr.bf16.mxu0 0
        %2739 = vmatmul.mubr.bf16.gmra.mrb[0].mxu0 %v2702
        %v2740 = vpop.f32.mrb[0].mxu0
        %v2741 = vadd.f32 %v2705, %v2740
        %v2742 = vpop.f32.mrb[0].mxu0
        %v2743 = vpop.f32.mrb[0].mxu0
        %v2744 = vpop.f32.mrb[0].mxu0
        %2745 = vdwg.mxu0
        %v2746 = vxor.u32 %v2741, 2147483648
        %v2747 = vmul.f32 %v2746, 1.442695
        %v2748 = vpow.pop %v2747
        %v2749 = vadd.f32 %v2748, 1.0
        %v2750 = vrcp.pop %v2749
        %v2751 = vmul.f32 1.0, %v2750
        %vm2752 = vcmask 122880
        %2753 = vst.msk [vmem:[%s379] sm:$0x1] %vm2752, %v2751
        %s2754 = sand.u32 %s270, 1
        %s2755 = scalar_lea.sflag [#allocation4], %s2754
        %s2756 = sand.u32 %s270, 1
        %s2757 = scalar_lea.vmem [#allocation3], %s2756
        // Predicated region
        $region65: #{urdmu_forward.1} parent=63 // pred_check
          %p2758 = pneg %p280
        $region66: #{urdmu_forward.1} parent=63 // pred_check_branch
          %2760 = sbr.rel (%p2758) target = $region68
        $region67: #{urdmu_forward.1} parent=63 // pred_region
          %s2762 = ssub.s32 16, 16
          %2763 = vsyncadd %s2755, %s2762
          %s2764 = smul.addr %s26, 16
          %s2765 = scalar_lea.hbm %s11, %s2764
          %s2767 = sshll.u32 %s2757, 4
          %s2768 = int_to_ptr.vmem [resolvable:$true] %s2767
          %2770 = dma.vmem_to_hbm [thread:$0]  %s2768, 16, %s2765, %s2755
        $region68: #{urdmu_forward.1} parent=63 // pred_fallthru
          _
      $region64: #{urdmu_forward.1} parent=5 // pred_fallthru
        _
      %p2771 = scmp.le.s32.totalorder 2, %s21
      // Predicated region
      $region69: #{urdmu_forward.1} parent=5 // pred_check
        %p2772 = pneg %p2771
      $region70: #{urdmu_forward.1} parent=5 // pred_check_branch
        %2774 = sbr.rel (%p2772) target = $region72
      $region71: #{urdmu_forward.1} parent=5 // pred_region
        %s2775 = ssub.s32 %s21, 2
        // Predicated region
        $region73: #{urdmu_forward.1} parent=71 // pred_check
          %p2776 = pneg %p286
        $region74: #{urdmu_forward.1} parent=71 // pred_check_branch
          %2778 = sbr.rel (%p2776) target = $region76
        $region75: #{urdmu_forward.1} parent=71 // pred_region
          %s2779 = sand.u32 %s271, 1
          %s2780 = scalar_lea.sflag [#allocation4], %s2779
          %s2781 = sand.u32 %s271, 1
          %s2782 = scalar_lea.vmem [#allocation3], %s2781
          %2783 = dma.done %s2780, 16
        $region76: #{urdmu_forward.1} parent=71 // pred_fallthru
          _
      $region72: #{urdmu_forward.1} parent=5 // pred_fallthru
        _
    $region6: #{urdmu_forward.1} parent=1 // loop_footer
      %s25 = sadd.s32 1, %s21
    $region7: #{urdmu_forward.1} parent=1 // loop_footer_branch
      %20 = sbr.rel target = $region3
    $region8: #{urdmu_forward.1} parent=1 // loop_exit
      _
    %2784 = vsyncpa [#allocation4], 1
    %s2785 = scalar_lea.sflag [#allocation4], 1
    %2786 = vsyncpa %s2785, 1

</llo_original>
